<compile_context>
chip_gen: v6e
topology: v6e:2x2x1
jax: 0.10.0
libtpu: 0.0.40
codegen_flags: <defaults>
</compile_context>

<pallas_src>
import functools
import math

import jax
import jax.numpy as jnp
from jax import lax
from jax.experimental import pallas as pl
from jax.experimental.pallas import tpu as pltpu


def _round_up(n, m):
    return ((n + m - 1) // m) * m


def _erf(x):
    # Abramowitz & Stegun 7.1.26 rational approximation (max abs err ~1.5e-7).
    # Uses only abs/exp/mul/add/where, which all lower cleanly in Mosaic, while keeping
    # the exact-GELU semantics of torch.nn.functional.gelu (default, non-tanh).
    a1, a2, a3, a4, a5 = (0.254829592, -0.284496736, 1.421413741,
                          -1.453152027, 1.061405429)
    p = 0.3275911
    ax = jnp.abs(x)
    t = 1.0 / (1.0 + p * ax)
    poly = ((((a5 * t + a4) * t + a3) * t + a2) * t + a1) * t
    y = 1.0 - poly * jnp.exp(-ax * ax)
    return jnp.where(x >= 0.0, y, -y)


def _geglu_ffn_kernel(x_ref, w1_ref, b1_ref, w2_ref, b2_ref, o_ref, *, hidden):
    x = x_ref[...]                                                     # (TM, D)  bf16
    # First Linear: bf16 operands, f32 accumulation on the MXU.
    h = jnp.dot(x, w1_ref[...], preferred_element_type=jnp.float32)   # (TM, 2H) f32
    h = h + b1_ref[...]                                                # (1, 2H) broadcast
    a = h[:, :hidden]                                                  # GEGLU "x" half
    g = h[:, hidden:]                                                  # GEGLU "gates" half
    # Exact GELU on the gates (f32 element-wise math).
    gelu_g = 0.5 * g * (1.0 + _erf(g * (1.0 / math.sqrt(2.0))))
    y = (gelu_g * a).astype(jnp.bfloat16)                              # bf16 MXU operand
    # Second Linear.
    out = jnp.dot(y, w2_ref[...], preferred_element_type=jnp.float32)  # (TM, D) f32
    o_ref[...] = (out + b2_ref[...]).astype(o_ref.dtype)


def feed_forward_forward(x, w1, b1, w2, b2, *, block_m=128):
    """FeedForward.forward with use_glu=True, dropout=0.0 (inference)."""
    *lead, dim = x.shape
    T = math.prod(lead)
    two_h = w1.shape[-1]
    hidden = two_h // 2
    assert w1.shape == (dim, two_h) and w2.shape == (hidden, dim)
    assert b1.shape == (two_h,) and b2.shape == (dim,)

    # bf16 operands for the MXU; biases stay f32 for the f32 epilogue.
    xb = x.reshape(T, dim).astype(jnp.bfloat16)
    w1b = w1.astype(jnp.bfloat16)
    w2b = w2.astype(jnp.bfloat16)
    b1r = b1.reshape(1, two_h).astype(jnp.float32)
    b2r = b2.reshape(1, dim).astype(jnp.float32)

    # Token tiling: sublane-aligned, at most block_m rows per grid step.
    tm = min(block_m, _round_up(T, 8))
    t_pad = _round_up(T, tm)
    if t_pad != T:
        xb = jnp.pad(xb, ((0, t_pad - T), (0, 0)))

    out = pl.pallas_call(
        functools.partial(_geglu_ffn_kernel, hidden=hidden),
        out_shape=jax.ShapeDtypeStruct((t_pad, dim), jnp.float32),
        grid=(t_pad // tm,),
        in_specs=[
            pl.BlockSpec((tm, dim), lambda t: (t, 0)),        # x tile
            pl.BlockSpec((dim, two_h), lambda t: (0, 0)),     # W1 (resident)
            pl.BlockSpec((1, two_h), lambda t: (0, 0)),       # b1 (resident)
            pl.BlockSpec((hidden, dim), lambda t: (0, 0)),    # W2 (resident)
            pl.BlockSpec((1, dim), lambda t: (0, 0)),         # b2 (resident)
        ],
        out_specs=pl.BlockSpec((tm, dim), lambda t: (t, 0)),
        compiler_params=pltpu.CompilerParams(
            dimension_semantics=("parallel",)),
    )(xb, w1b, b1r, w2b, b2r)

    return out[:T].reshape(*lead, dim)


# ------------------------------- pure-JAX reference check -------------------------------
def feed_forward_reference(x, w1, b1, w2, b2):
    # Same math (same bf16-operand / f32-accumulate recipe) in plain JAX.
    *lead, dim = x.shape
    hidden = w2.shape[0]
    xb = x.reshape(-1, dim).astype(jnp.bfloat16)
    h = jnp.dot(xb, w1.astype(jnp.bfloat16),
                preferred_element_type=jnp.float32) + b1.astype(jnp.float32)
    a, g = h[:, :hidden], h[:, hidden:]
    y = (jax.nn.gelu(g, approximate=False) * a).astype(jnp.bfloat16)
    out = jnp.dot(y, w2.astype(jnp.bfloat16),
                  preferred_element_type=jnp.float32) + b2.astype(jnp.float32)
    return out.reshape(*lead, dim).astype(jnp.float32)


if __name__ == "__main__":
    key = jax.random.PRNGKey(0)
    kx, kw1, kb1, kw2, kb2 = jax.random.split(key, 5)

    # Small but lane-dense shapes: batch=2, seq=128, dim=128, hidden_dim=256.
    B, S, dim, hidden = 2, 128, 128, 256
    x = jax.random.normal(kx, (B, S, dim), jnp.float32)
    w1 = jax.random.normal(kw1, (dim, 2 * hidden), jnp.float32) / math.sqrt(dim)
    b1 = jax.random.normal(kb1, (2 * hidden,), jnp.float32) * 0.02
    w2 = jax.random.normal(kw2, (hidden, dim), jnp.float32) / math.sqrt(hidden)
    b2 = jax.random.normal(kb2, (dim,), jnp.float32) * 0.02

    out = feed_forward_forward(x, w1, b1, w2, b2)
    out = jax.block_until_ready(out)

    ref = feed_forward_reference(x, w1, b1, w2, b2)
    assert out.shape == (B, S, dim)
    max_err = float(jnp.max(jnp.abs(out - ref)))
    assert jnp.allclose(out, ref, rtol=1e-2, atol=1e-2), max_err

    print("KERNEL_OK")
</pallas_src>

<mosaic_0001>
module attributes {stable_mosaic.version = 11 : i64} {
  func.func @_geglu_ffn_kernel(%arg0: i32, %arg1: memref<128x128xbf16, #tpu.memory_space<vmem>>, %arg2: memref<128x512xbf16, #tpu.memory_space<vmem>>, %arg3: memref<1x512xf32, #tpu.memory_space<vmem>>, %arg4: memref<256x128xbf16, #tpu.memory_space<vmem>>, %arg5: memref<1x128xf32, #tpu.memory_space<vmem>>, %arg6: memref<128x128xf32, #tpu.memory_space<vmem>>) attributes {dimension_semantics = [#tpu.dimension_semantics<parallel>], iteration_bounds = array<i64: 2>, scalar_prefetch = 0 : i64, scratch_operands = 0 : i64, tpu.core_type = #tpu.core_type<tc>, window_params = [{transform_indices = @transform_0, window_bounds = array<i64: 128, 128>}, {pipeline_mode = #tpu.pipeline_mode<synchronous>, transform_indices = @transform_1, window_bounds = array<i64: 128, 512>}, {pipeline_mode = #tpu.pipeline_mode<synchronous>, transform_indices = @transform_2, window_bounds = array<i64: 1, 512>}, {pipeline_mode = #tpu.pipeline_mode<synchronous>, transform_indices = @transform_3, window_bounds = array<i64: 256, 128>}, {pipeline_mode = #tpu.pipeline_mode<synchronous>, transform_indices = @transform_4, window_bounds = array<i64: 1, 128>}, {transform_indices = @transform_5, window_bounds = array<i64: 128, 128>}]} {
    %c0 = arith.constant 0 : index
    %c0_0 = arith.constant 0 : index
    %0 = vector.load %arg1[%c0, %c0_0] : memref<128x128xbf16, #tpu.memory_space<vmem>>, vector<128x128xbf16>
    %c0_1 = arith.constant 0 : index
    %c0_2 = arith.constant 0 : index
    %1 = vector.load %arg2[%c0_1, %c0_2] : memref<128x512xbf16, #tpu.memory_space<vmem>>, vector<128x512xbf16>
    %cst = arith.constant dense<0.000000e+00> : vector<128x512xf32>
    %2 = tpu.matmul %0, %1, %cst {dimension_numbers = #tpu.dot_dimension_numbers<[1], [0], [0], [1], [0, 0, 1, 1], [], []>} : vector<128x128xbf16>, vector<128x512xbf16>, vector<128x512xf32> -> vector<128x512xf32>
    %c0_3 = arith.constant 0 : index
    %c0_4 = arith.constant 0 : index
    %3 = vector.load %arg3[%c0_3, %c0_4] : memref<1x512xf32, #tpu.memory_space<vmem>>, vector<1x512xf32>
    %4 = vector.broadcast %3 : vector<1x512xf32> to vector<128x512xf32>
    %5 = arith.addf %2, %4 : vector<128x512xf32>
    %6 = vector.extract_strided_slice %5 {offsets = [0, 0], sizes = [128, 256], strides = [1, 1]} : vector<128x512xf32> to vector<128x256xf32>
    %7 = vector.extract_strided_slice %5 {offsets = [0, 256], sizes = [128, 256], strides = [1, 1]} : vector<128x512xf32> to vector<128x256xf32>
    %cst_5 = arith.constant 5.000000e-01 : f32
    %8 = vector.broadcast %cst_5 : f32 to vector<128x256xf32>
    %9 = arith.mulf %8, %7 : vector<128x256xf32>
    %cst_6 = arith.constant 0.707106769 : f32
    %10 = vector.broadcast %cst_6 : f32 to vector<128x256xf32>
    %11 = arith.mulf %7, %10 : vector<128x256xf32>
    %12 = math.absf %11 : vector<128x256xf32>
    %cst_7 = arith.constant 0.327591091 : f32
    %13 = vector.broadcast %cst_7 : f32 to vector<128x256xf32>
    %14 = arith.mulf %13, %12 : vector<128x256xf32>
    %cst_8 = arith.constant 1.000000e+00 : f32
    %15 = vector.broadcast %cst_8 : f32 to vector<128x256xf32>
    %16 = arith.addf %15, %14 : vector<128x256xf32>
    %cst_9 = arith.constant 1.000000e+00 : f32
    %17 = vector.broadcast %cst_9 : f32 to vector<128x256xf32>
    %18 = arith.divf %17, %16 : vector<128x256xf32>
    %cst_10 = arith.constant 1.06140542 : f32
    %19 = vector.broadcast %cst_10 : f32 to vector<128x256xf32>
    %20 = arith.mulf %19, %18 : vector<128x256xf32>
    %cst_11 = arith.constant -1.45315206 : f32
    %21 = vector.broadcast %cst_11 : f32 to vector<128x256xf32>
    %22 = arith.addf %20, %21 : vector<128x256xf32>
    %23 = arith.mulf %22, %18 : vector<128x256xf32>
    %cst_12 = arith.constant 1.42141378 : f32
    %24 = vector.broadcast %cst_12 : f32 to vector<128x256xf32>
    %25 = arith.addf %23, %24 : vector<128x256xf32>
    %26 = arith.mulf %25, %18 : vector<128x256xf32>
    %cst_13 = arith.constant -0.284496725 : f32
    %27 = vector.broadcast %cst_13 : f32 to vector<128x256xf32>
    %28 = arith.addf %26, %27 : vector<128x256xf32>
    %29 = arith.mulf %28, %18 : vector<128x256xf32>
    %cst_14 = arith.constant 0.254829586 : f32
    %30 = vector.broadcast %cst_14 : f32 to vector<128x256xf32>
    %31 = arith.addf %29, %30 : vector<128x256xf32>
    %32 = arith.mulf %31, %18 : vector<128x256xf32>
    %cst_15 = arith.constant 0.000000e+00 : f32
    %33 = vector.broadcast %cst_15 : f32 to vector<128x256xf32>
    %34 = arith.subf %33, %12 : vector<128x256xf32>
    %35 = arith.mulf %34, %12 : vector<128x256xf32>
    %36 = math.exp %35 : vector<128x256xf32>
    %37 = arith.mulf %32, %36 : vector<128x256xf32>
    %cst_16 = arith.constant 1.000000e+00 : f32
    %38 = vector.broadcast %cst_16 : f32 to vector<128x256xf32>
    %39 = arith.subf %38, %37 : vector<128x256xf32>
    %cst_17 = arith.constant 0.000000e+00 : f32
    %40 = vector.broadcast %cst_17 : f32 to vector<128x256xf32>
    %41 = arith.cmpf oge, %11, %40 : vector<128x256xf32>
    %cst_18 = arith.constant 0.000000e+00 : f32
    %42 = vector.broadcast %cst_18 : f32 to vector<128x256xf32>
    %43 = arith.subf %42, %39 : vector<128x256xf32>
    %44 = arith.select %41, %39, %43 : vector<128x256xi1>, vector<128x256xf32>
    %cst_19 = arith.constant 1.000000e+00 : f32
    %45 = vector.broadcast %cst_19 : f32 to vector<128x256xf32>
    %46 = arith.addf %45, %44 : vector<128x256xf32>
    %47 = arith.mulf %9, %46 : vector<128x256xf32>
    %48 = arith.mulf %47, %6 : vector<128x256xf32>
    %49 = arith.truncf %48 : vector<128x256xf32> to vector<128x256xbf16>
    %c0_20 = arith.constant 0 : index
    %c0_21 = arith.constant 0 : index
    %50 = vector.load %arg4[%c0_20, %c0_21] : memref<256x128xbf16, #tpu.memory_space<vmem>>, vector<256x128xbf16>
    %cst_22 = arith.constant dense<0.000000e+00> : vector<128x128xf32>
    %51 = tpu.matmul %49, %50, %cst_22 {dimension_numbers = #tpu.dot_dimension_numbers<[1], [0], [0], [1], [0, 0, 1, 1], [], []>} : vector<128x256xbf16>, vector<256x128xbf16>, vector<128x128xf32> -> vector<128x128xf32>
    %c0_23 = arith.constant 0 : index
    %c0_24 = arith.constant 0 : index
    %52 = vector.load %arg5[%c0_23, %c0_24] : memref<1x128xf32, #tpu.memory_space<vmem>>, vector<1x128xf32>
    %53 = vector.broadcast %52 : vector<1x128xf32> to vector<128x128xf32>
    %54 = arith.addf %51, %53 : vector<128x128xf32>
    %c0_25 = arith.constant 0 : index
    %c0_26 = arith.constant 0 : index
    %55 = vector.load %arg6[%c0_25, %c0_26] : memref<128x128xf32, #tpu.memory_space<vmem>>, vector<128x128xf32>
    tpu.vector_store %arg6[%c0_25, %c0_26], %54 {strides = array<i32>} : memref<128x128xf32, #tpu.memory_space<vmem>>, vector<128x128xf32>,
    return
  }
  func.func @transform_0(%arg0: i32) -> (i32, i32) {
    %c0_i32 = arith.constant 0 : i32
    %c0_i32_0 = arith.constant 0 : i32
    return %arg0, %c0_i32 : i32, i32
  }
  func.func @transform_1(%arg0: i32) -> (i32, i32) {
    %c0_i32 = arith.constant 0 : i32
    %c0_i32_0 = arith.constant 0 : i32
    %c0_i32_1 = arith.constant 0 : i32
    return %c0_i32, %c0_i32_0 : i32, i32
  }
  func.func @transform_2(%arg0: i32) -> (i32, i32) {
    %c0_i32 = arith.constant 0 : i32
    %c0_i32_0 = arith.constant 0 : i32
    %c0_i32_1 = arith.constant 0 : i32
    return %c0_i32, %c0_i32_0 : i32, i32
  }
  func.func @transform_3(%arg0: i32) -> (i32, i32) {
    %c0_i32 = arith.constant 0 : i32
    %c0_i32_0 = arith.constant 0 : i32
    %c0_i32_1 = arith.constant 0 : i32
    return %c0_i32, %c0_i32_0 : i32, i32
  }
  func.func @transform_4(%arg0: i32) -> (i32, i32) {
    %c0_i32 = arith.constant 0 : i32
    %c0_i32_0 = arith.constant 0 : i32
    %c0_i32_1 = arith.constant 0 : i32
    return %c0_i32, %c0_i32_0 : i32, i32
  }
  func.func @transform_5(%arg0: i32) -> (i32, i32) {
    %c0_i32 = arith.constant 0 : i32
    %c0_i32_0 = arith.constant 0 : i32
    return %arg0, %c0_i32 : i32, i32
  }
}

</mosaic_0001>

<llo_original>
// kernel: tpu_custom_call.1
$region0: #{tpu_custom_call.1}
  #allocation0 [shape = 'u32[]', space=smem, size = 0x4, offset = 0x4, fixed_abs, tag = 'smem constant byte address 0x4 - core index']
  #allocation1 [shape = 'u32[144,128]{1,0:T(1,128)}', space=vmem, size = 0x12000, scoped, tag = 'internal scratch']
  %s0 = inlined_call_operand.hbm [shape: bf16[256,128], index: 0, kind: input, shape index: {}]
  %s1 = inlined_call_operand.hbm [shape: bf16[128,512], index: 1, kind: input, shape index: {}]
  %s2 = inlined_call_operand.hbm [shape: f32[1,512], index: 2, kind: input, shape index: {}]
  %s3 = inlined_call_operand.hbm [shape: bf16[256,128], index: 3, kind: input, shape index: {}]
  %s4 = inlined_call_operand.vmem [shape: f32[1,128], index: 4, kind: input, shape index: {}]
  %s5 = inlined_call_operand.hbm [shape: f32[256,128], index: 5, kind: output, shape index: {}]
  %s6 = sld [smem:[#allocation0]]
  $region69: #{tpu_custom_call.1} parent=0
    _
  %s8 = ssub.s32 1, %s6
  %s9 = scalar_select 0, %s8, %s6
  $region1: #{tpu_custom_call.1} parent=0
    #allocation2 [shape = 'u8[65536]{0}', space=vmem, size = 0x10000, scoped, tag = 'input window, operand 0']
    #allocation3 [shape = 's32[2]{0}', space=sflag, size = 0x8, scoped, tag = 'scoped memory for tpu_custom_call.1']
    #allocation4 [shape = 's32[2]{0}', space=sflag, size = 0x8, scoped, tag = 'scoped memory for tpu_custom_call.1']
    #allocation5 [shape = 'u8[131072]{0}', space=vmem, size = 0x20000, scoped, tag = 'input window, operand 1, single buffered']
    #allocation6 [shape = 's32[1]{0}', space=sflag, size = 0x4, scoped, tag = 'scoped memory for tpu_custom_call.1']
    #allocation7 [shape = 'u8[2048]{0}', space=vmem, size = 0x800, scoped, tag = 'input window, operand 2, single buffered']
    #allocation8 [shape = 'u8[65536]{0}', space=vmem, size = 0x10000, scoped, tag = 'input window, operand 3, single buffered']
    #allocation9 [shape = 's32[1]{0}', space=sflag, size = 0x4, scoped, tag = 'scoped memory for tpu_custom_call.1']
    #allocation10 [shape = 'u8[131072]{0}', space=vmem, size = 0x20000, scoped, tag = 'output window, operand 0']
    %10 = vsyncpa [#allocation3], 0
    %s11 = scalar_lea.sflag [#allocation3], 1
    %12 = vsyncpa %s11, 0
    %13 = vsyncpa [#allocation6], 0
    %14 = vsyncpa [#allocation9], 0
    %15 = vsyncpa [#allocation4], 0
    %s16 = scalar_lea.sflag [#allocation4], 1
    %17 = vsyncpa %s16, 0
    loop: start=0, step=1, limit=4
    $region2: #{tpu_custom_call.1} parent=1 // loop_pre_header
      _
    $region3: #{tpu_custom_call.1} parent=1 // loop_header
      %s19 = sphi 0, %s23
      %p20 = scmp.ge.s32.totalorder %s19, 4
      %s29 = sphi 0, %s31
      %s32 = sphi 0, %s29
      %s33 = sphi 0, %s32
      %s49 = sphi 0, %s33
      %s53 = sphi 0, %s53
      %s55 = sphi 0, %s53
      %s56 = sphi 0, %s55
      %s70 = sphi 0, %s56
      %s74 = sphi 0, %s74
      %s76 = sphi 0, %s74
      %s77 = sphi 0, %s76
      %s91 = sphi 0, %s77
      %s95 = sphi 0, %s95
      %s97 = sphi 0, %s95
      %s98 = sphi 0, %s97
      %s112 = sphi 0, %s98
      %s116 = sphi 0, %s116
      %s118 = sphi 0, %s116
      %s119 = sphi 0, %s118
      %s133 = sphi 0, %s119
      %s139 = sphi 0, %s141
      %s142 = sphi 0, %s139
      %s143 = sphi 0, %s142
      %s159 = sphi 0, %s143
    $region4: #{tpu_custom_call.1} parent=1 // loop_header_branch
      %22 = sbr.rel (%p20) target = $region8
    $region5: #{tpu_custom_call.1} parent=1 // loop_body
      %s24 = ssub.s32 %s19, 1
      %s25 = ssub.s32 %s19, 2
      %s26 = sadd.s32 %s19, 1
      %s27 = ssub.s32 %s19, %s26
      %p28 = scmp.eq.s32.totalorder %s27, 0
      %s30 = sadd.s32 %s29, 1
      %s31 = scalar_select %p28, %s29, %s30
      %p34 = pneg %p28
      %p35 = scmp.eq.s32.totalorder %s19, 1
      %p36 = por %p34, %p35
      %p37 = scmp.ne.s32.totalorder %s29, %s32
      %p38 = scmp.eq.s32.totalorder %s19, 0
      %p39 = por %p37, %p38
      %p40 = scmp.ne.s32.totalorder %s29, %s32
      %p41 = scmp.eq.s32.totalorder %s24, 1
      %p42 = por %p40, %p41
      %p43 = scmp.ne.s32.totalorder %s32, %s33
      %p44 = scmp.eq.s32.totalorder %s24, 0
      %p45 = por %p43, %p44
      %p46 = scmp.ne.s32.totalorder %s32, %s33
      %p47 = scmp.eq.s32.totalorder %s25, 1
      %p48 = por %p46, %p47
      %p50 = scmp.ne.s32.totalorder %s33, %s49
      %p51 = scmp.eq.s32.totalorder %s25, 0
      %p52 = por %p50, %p51
      %s54 = sadd.s32 %s53, 1
      %p57 = scmp.eq.s32.totalorder %s19, 1
      %p58 = scmp.ne.s32.totalorder %s53, %s55
      %p59 = scmp.eq.s32.totalorder %s19, 0
      %p60 = por %p58, %p59
      %p61 = scmp.ne.s32.totalorder %s53, %s55
      %p62 = scmp.eq.s32.totalorder %s24, 1
      %p63 = por %p61, %p62
      %p64 = scmp.ne.s32.totalorder %s55, %s56
      %p65 = scmp.eq.s32.totalorder %s24, 0
      %p66 = por %p64, %p65
      %p67 = scmp.ne.s32.totalorder %s55, %s56
      %p68 = scmp.eq.s32.totalorder %s25, 1
      %p69 = por %p67, %p68
      %p71 = scmp.ne.s32.totalorder %s56, %s70
      %p72 = scmp.eq.s32.totalorder %s25, 0
      %p73 = por %p71, %p72
      %s75 = sadd.s32 %s74, 1
      %p78 = scmp.eq.s32.totalorder %s19, 1
      %p79 = scmp.ne.s32.totalorder %s74, %s76
      %p80 = scmp.eq.s32.totalorder %s19, 0
      %p81 = por %p79, %p80
      %p82 = scmp.ne.s32.totalorder %s74, %s76
      %p83 = scmp.eq.s32.totalorder %s24, 1
      %p84 = por %p82, %p83
      %p85 = scmp.ne.s32.totalorder %s76, %s77
      %p86 = scmp.eq.s32.totalorder %s24, 0
      %p87 = por %p85, %p86
      %p88 = scmp.ne.s32.totalorder %s76, %s77
      %p89 = scmp.eq.s32.totalorder %s25, 1
      %p90 = por %p88, %p89
      %p92 = scmp.ne.s32.totalorder %s77, %s91
      %p93 = scmp.eq.s32.totalorder %s25, 0
      %p94 = por %p92, %p93
      %s96 = sadd.s32 %s95, 1
      %p99 = scmp.eq.s32.totalorder %s19, 1
      %p100 = scmp.ne.s32.totalorder %s95, %s97
      %p101 = scmp.eq.s32.totalorder %s19, 0
      %p102 = por %p100, %p101
      %p103 = scmp.ne.s32.totalorder %s95, %s97
      %p104 = scmp.eq.s32.totalorder %s24, 1
      %p105 = por %p103, %p104
      %p106 = scmp.ne.s32.totalorder %s97, %s98
      %p107 = scmp.eq.s32.totalorder %s24, 0
      %p108 = por %p106, %p107
      %p109 = scmp.ne.s32.totalorder %s97, %s98
      %p110 = scmp.eq.s32.totalorder %s25, 1
      %p111 = por %p109, %p110
      %p113 = scmp.ne.s32.totalorder %s98, %s112
      %p114 = scmp.eq.s32.totalorder %s25, 0
      %p115 = por %p113, %p114
      %s117 = sadd.s32 %s116, 1
      %p120 = scmp.eq.s32.totalorder %s19, 1
      %p121 = scmp.ne.s32.totalorder %s116, %s118
      %p122 = scmp.eq.s32.totalorder %s19, 0
      %p123 = por %p121, %p122
      %p124 = scmp.ne.s32.totalorder %s116, %s118
      %p125 = scmp.eq.s32.totalorder %s24, 1
      %p126 = por %p124, %p125
      %p127 = scmp.ne.s32.totalorder %s118, %s119
      %p128 = scmp.eq.s32.totalorder %s24, 0
      %p129 = por %p127, %p128
      %p130 = scmp.ne.s32.totalorder %s118, %s119
      %p131 = scmp.eq.s32.totalorder %s25, 1
      %p132 = por %p130, %p131
      %p134 = scmp.ne.s32.totalorder %s119, %s133
      %p135 = scmp.eq.s32.totalorder %s25, 0
      %p136 = por %p134, %p135
      %s137 = ssub.s32 %s19, %s26
      %p138 = scmp.eq.s32.totalorder %s137, 0
      %s140 = sadd.s32 %s139, 1
      %s141 = scalar_select %p138, %s139, %s140
      %p144 = pneg %p138
      %p145 = scmp.eq.s32.totalorder %s19, 1
      %p146 = por %p144, %p145
      %p147 = scmp.ne.s32.totalorder %s139, %s142
      %p148 = scmp.eq.s32.totalorder %s19, 0
      %p149 = por %p147, %p148
      %p150 = scmp.ne.s32.totalorder %s139, %s142
      %p151 = scmp.eq.s32.totalorder %s24, 1
      %p152 = por %p150, %p151
      %p153 = scmp.ne.s32.totalorder %s142, %s143
      %p154 = scmp.eq.s32.totalorder %s24, 0
      %p155 = por %p153, %p154
      %p156 = scmp.ne.s32.totalorder %s142, %s143
      %p157 = scmp.eq.s32.totalorder %s25, 1
      %p158 = por %p156, %p157
      %p160 = scmp.ne.s32.totalorder %s143, %s159
      %p161 = scmp.eq.s32.totalorder %s25, 0
      %p162 = por %p160, %p161
      %p163 = scmp.le.s32.totalorder 1, %s19
      %p164 = scmp.lt.s32.totalorder %s19, 3
      %p165 = pnand %p163, %p164
      %p166 = pneg %p165
      // Predicated region
      $region9: #{tpu_custom_call.1} parent=5 // pred_check
        _
      $region10: #{tpu_custom_call.1} parent=5 // pred_check_branch
        %168 = sbr.rel (%p165) target = $region12
      $region11: #{tpu_custom_call.1} parent=5 // pred_region
        %s169 = ssub.s32 %s19, 1
        // Predicated region
        $region13: #{tpu_custom_call.1} parent=11 // pred_check
          %p170 = pneg %p66
        $region14: #{tpu_custom_call.1} parent=11 // pred_check_branch
          %172 = sbr.rel (%p170) target = $region16
        $region15: #{tpu_custom_call.1} parent=11 // pred_region
          %s174 = ssub.s32 4096, 4096
          %175 = vsyncadd [#allocation6], %s174
          %s176 = sshll.u32 [#allocation5], 4
          %s177 = int_to_ptr.vmem [resolvable:$true] %s176
          %182 = dma.hbm_to_vmem [thread:$0]  %s1, 4096, %s177, [#allocation6], 256, 256, 16
        $region16: #{tpu_custom_call.1} parent=11 // pred_fallthru
          _
        // Predicated region
        $region17: #{tpu_custom_call.1} parent=11 // pred_check
          %p183 = pneg %p87
        $region18: #{tpu_custom_call.1} parent=11 // pred_check_branch
          %185 = sbr.rel (%p183) target = $region20
        $region19: #{tpu_custom_call.1} parent=11 // pred_region
          %s187 = ssub.s32 64, 64
          %188 = vsyncadd [#allocation6], %s187
          %s190 = sshll.u32 [#allocation7], 4
          %s191 = int_to_ptr.vmem [resolvable:$true] %s190
          %193 = dma.hbm_to_vmem [thread:$0]  %s2, 64, %s191, [#allocation6]
        $region20: #{tpu_custom_call.1} parent=11 // pred_fallthru
          _
        // Predicated region
        $region21: #{tpu_custom_call.1} parent=11 // pred_check
          %p194 = pneg %p108
        $region22: #{tpu_custom_call.1} parent=11 // pred_check_branch
          %196 = sbr.rel (%p194) target = $region24
        $region23: #{tpu_custom_call.1} parent=11 // pred_region
          %s198 = ssub.s32 2048, 2048
          %199 = vsyncadd [#allocation9], %s198
          %s200 = sshll.u32 [#allocation8], 4
          %s201 = int_to_ptr.vmem [resolvable:$true] %s200
          %206 = dma.hbm_to_vmem [thread:$0]  %s3, 2048, %s201, [#allocation9], 64, 64, 4
        $region24: #{tpu_custom_call.1} parent=11 // pred_fallthru
          _
        // Predicated region
        $region25: #{tpu_custom_call.1} parent=11 // pred_check
          %p207 = pneg %p129
        $region26: #{tpu_custom_call.1} parent=11 // pred_check_branch
          %209 = sbr.rel (%p207) target = $region28
        $region27: #{tpu_custom_call.1} parent=11 // pred_region
          _
        $region28: #{tpu_custom_call.1} parent=11 // pred_fallthru
          _
      $region12: #{tpu_custom_call.1} parent=5 // pred_fallthru
        _
      %p210 = scmp.lt.s32.totalorder %s19, 2
      // Predicated region
      $region29: #{tpu_custom_call.1} parent=5 // pred_check
        %p211 = pneg %p210
      $region30: #{tpu_custom_call.1} parent=5 // pred_check_branch
        %213 = sbr.rel (%p211) target = $region32
      $region31: #{tpu_custom_call.1} parent=5 // pred_region
        // Predicated region
        $region33: #{tpu_custom_call.1} parent=31 // pred_check
          %p214 = pneg %p39
        $region34: #{tpu_custom_call.1} parent=31 // pred_check_branch
          %216 = sbr.rel (%p214) target = $region36
        $region35: #{tpu_custom_call.1} parent=31 // pred_region
          %s217 = sand.u32 %s29, 1
          %s218 = scalar_lea.sflag [#allocation3], %s217
          %s219 = sand.u32 %s29, 1
          %s220 = smul.addr %s219, 64
          %s221 = scalar_lea.vmem [#allocation2], %s220
          %s222 = smul.u32 16, %s19
          %s224 = ssub.s32 1024, 1024
          %225 = vsyncadd %s218, %s224
          %s226 = smul.addr %s222, 64
          %s227 = scalar_lea.hbm %s0, %s226
          %s228 = sshll.u32 %s221, 4
          %s229 = int_to_ptr.vmem [resolvable:$true] %s228
          %234 = dma.hbm_to_vmem [thread:$0]  %s227, 1024, %s229, %s218, 64, 64, 4
        $region36: #{tpu_custom_call.1} parent=31 // pred_fallthru
          _
      $region32: #{tpu_custom_call.1} parent=5 // pred_fallthru
        _
      %p235 = scmp.le.s32.totalorder 1, %s19
      %p236 = scmp.lt.s32.totalorder %s19, 3
      %p237 = pnand %p235, %p236
      %p238 = pneg %p237
      // Predicated region
      $region37: #{tpu_custom_call.1} parent=5 // pred_check
        _
      $region38: #{tpu_custom_call.1} parent=5 // pred_check_branch
        %240 = sbr.rel (%p237) target = $region40
      $region39: #{tpu_custom_call.1} parent=5 // pred_region
        %s241 = ssub.s32 %s19, 1
        %s242 = sand.u32 %s32, 1
        %s243 = scalar_lea.sflag [#allocation3], %s242
        %s244 = sand.u32 %s32, 1
        %s245 = smul.addr %s244, 64
        %s246 = scalar_lea.vmem [#allocation2], %s245
        // Predicated region
        $region41: #{tpu_custom_call.1} parent=39 // pred_check
          %p247 = pneg %p45
        $region42: #{tpu_custom_call.1} parent=39 // pred_check_branch
          %249 = sbr.rel (%p247) target = $region44
        $region43: #{tpu_custom_call.1} parent=39 // pred_region
          %250 = dma.done %s243, 1024
        $region44: #{tpu_custom_call.1} parent=39 // pred_fallthru
          _
        // Predicated region
        $region45: #{tpu_custom_call.1} parent=39 // pred_check
          %p251 = pneg %p66
        $region46: #{tpu_custom_call.1} parent=39 // pred_check_branch
          %253 = sbr.rel (%p251) target = $region48
        $region47: #{tpu_custom_call.1} parent=39 // pred_region
          %254 = dma.done [#allocation6], 4096
        $region48: #{tpu_custom_call.1} parent=39 // pred_fallthru
          _
        // Predicated region
        $region49: #{tpu_custom_call.1} parent=39 // pred_check
          %p255 = pneg %p87
        $region50: #{tpu_custom_call.1} parent=39 // pred_check_branch
          %257 = sbr.rel (%p255) target = $region52
        $region51: #{tpu_custom_call.1} parent=39 // pred_region
          %258 = dma.done [#allocation6], 64
        $region52: #{tpu_custom_call.1} parent=39 // pred_fallthru
          _
        // Predicated region
        $region53: #{tpu_custom_call.1} parent=39 // pred_check
          %p259 = pneg %p108
        $region54: #{tpu_custom_call.1} parent=39 // pred_check_branch
          %261 = sbr.rel (%p259) target = $region56
        $region55: #{tpu_custom_call.1} parent=39 // pred_region
          %262 = dma.done [#allocation9], 2048
        $region56: #{tpu_custom_call.1} parent=39 // pred_fallthru
          _
        %s263 = sand.u32 %s32, 1
        %s264 = scalar_lea.sflag [#allocation3], %s263
        %s265 = sand.u32 %s32, 1
        %s266 = smul.addr %s265, 64
        %s267 = scalar_lea.vmem [#allocation2], %s266
        %p268 = pneg %p45
        %p269 = pneg %p42
        %p270 = pneg %p66
        %p271 = pneg %p63
        %p272 = pneg %p87
        %p273 = pneg %p84
        %p274 = pneg %p108
        %p275 = pneg %p105
        %p276 = pneg %p129
        %p277 = pneg %p126
        %p278 = pneg %p155
        %p279 = pneg %p152
        %s280 = sand.u32 %s142, 1
        %s281 = scalar_lea.sflag [#allocation4], %s280
        %s282 = sand.u32 %s142, 1
        %s283 = smul.addr %s282, 128
        %s284 = scalar_lea.vmem [#allocation10], %s283
        %s285 = smul.u32 16, %s24
        %s286 = smul.u32 16, %s24
        %v288 = vld [vmem:[%s246] sm:$0xf]
        %v289 = vld [vmem:[%s246 + $0x4] sm:$0xf]
        %v290 = vld [vmem:[%s246 + $0x8] sm:$0xf]
        %v291 = vld [vmem:[%s246 + $0xc] sm:$0xf]
        %v292 = vld [vmem:[%s246 + $0x10] sm:$0xf]
        %v293 = vld [vmem:[%s246 + $0x14] sm:$0xf]
        %v294 = vld [vmem:[%s246 + $0x18] sm:$0xf]
        %v295 = vld [vmem:[%s246 + $0x1c] sm:$0xf]
        %v296 = vld [vmem:[%s246 + $0x20] sm:$0xf]
        %v297 = vld [vmem:[%s246 + $0x24] sm:$0xf]
        %v298 = vld [vmem:[%s246 + $0x28] sm:$0xf]
        %v299 = vld [vmem:[%s246 + $0x2c] sm:$0xf]
        %v300 = vld [vmem:[%s246 + $0x30] sm:$0xf]
        %v301 = vld [vmem:[%s246 + $0x34] sm:$0xf]
        %v302 = vld [vmem:[%s246 + $0x38] sm:$0xf]
        %v303 = vld [vmem:[%s246 + $0x3c] sm:$0xf]
        %v304 = vld [vmem:[#allocation5] sm:$0xff]
        %v305 = vld [vmem:[#allocation5 + $0x8] sm:$0xff]
        %v306 = vld [vmem:[#allocation5 + $0x10] sm:$0xff]
        %v307 = vld [vmem:[#allocation5 + $0x18] sm:$0xff]
        %v308 = vld [vmem:[#allocation5 + $0x20] sm:$0xff]
        %v309 = vld [vmem:[#allocation5 + $0x28] sm:$0xff]
        %v310 = vld [vmem:[#allocation5 + $0x30] sm:$0xff]
        %v311 = vld [vmem:[#allocation5 + $0x38] sm:$0xff]
        %v312 = vld [vmem:[#allocation5 + $0x40] sm:$0xff]
        %v313 = vld [vmem:[#allocation5 + $0x48] sm:$0xff]
        %v314 = vld [vmem:[#allocation5 + $0x50] sm:$0xff]
        %v315 = vld [vmem:[#allocation5 + $0x58] sm:$0xff]
        %v316 = vld [vmem:[#allocation5 + $0x60] sm:$0xff]
        %v317 = vld [vmem:[#allocation5 + $0x68] sm:$0xff]
        %v318 = vld [vmem:[#allocation5 + $0x70] sm:$0xff]
        %v319 = vld [vmem:[#allocation5 + $0x78] sm:$0xff]
        %v320 = vld [vmem:[#allocation5 + $0x80] sm:$0xff]
        %v321 = vld [vmem:[#allocation5 + $0x88] sm:$0xff]
        %v322 = vld [vmem:[#allocation5 + $0x90] sm:$0xff]
        %v323 = vld [vmem:[#allocation5 + $0x98] sm:$0xff]
        %v324 = vld [vmem:[#allocation5 + $0xa0] sm:$0xff]
        %v325 = vld [vmem:[#allocation5 + $0xa8] sm:$0xff]
        %v326 = vld [vmem:[#allocation5 + $0xb0] sm:$0xff]
        %v327 = vld [vmem:[#allocation5 + $0xb8] sm:$0xff]
        %v328 = vld [vmem:[#allocation5 + $0xc0] sm:$0xff]
        %v329 = vld [vmem:[#allocation5 + $0xc8] sm:$0xff]
        %v330 = vld [vmem:[#allocation5 + $0xd0] sm:$0xff]
        %v331 = vld [vmem:[#allocation5 + $0xd8] sm:$0xff]
        %v332 = vld [vmem:[#allocation5 + $0xe0] sm:$0xff]
        %v333 = vld [vmem:[#allocation5 + $0xe8] sm:$0xff]
        %v334 = vld [vmem:[#allocation5 + $0xf0] sm:$0xff]
        %v335 = vld [vmem:[#allocation5 + $0xf8] sm:$0xff]
        %v336 = vld [vmem:[#allocation7] sm:$0xf]
        %v338 = vlaneseq
        %v339 = vshrl.u32 %v338, 7
        %v340 = vsub.s32 0, %v339
        %v341 = vrot.slane %v336, %v340
        %v342 = vlaneseq
        %v343 = vshrl.u32 %v342, 7
        %v344 = vsub.s32 1, %v343
        %v345 = vrot.slane %v336, %v344
        %v346 = vlaneseq
        %v347 = vshrl.u32 %v346, 7
        %v348 = vsub.s32 2, %v347
        %v349 = vrot.slane %v336, %v348
        %v350 = vlaneseq
        %v351 = vshrl.u32 %v350, 7
        %v352 = vsub.s32 3, %v351
        %v353 = vrot.slane %v336, %v352
        %v374 = vunpack.c.l.b16 %v288
        %v375 = vunpack.c.l.b16 %v289
        %v376 = vunpack.c.l.b16 %v290
        %v377 = vunpack.c.l.b16 %v291
        %v378 = vunpack.c.l.b16 %v292
        %v379 = vunpack.c.l.b16 %v293
        %v380 = vunpack.c.l.b16 %v294
        %v381 = vunpack.c.l.b16 %v295
        %v382 = vunpack.c.l.b16 %v296
        %v383 = vunpack.c.l.b16 %v297
        %v384 = vunpack.c.l.b16 %v298
        %v385 = vunpack.c.l.b16 %v299
        %v386 = vunpack.c.l.b16 %v300
        %v387 = vunpack.c.l.b16 %v301
        %v388 = vunpack.c.l.b16 %v302
        %v389 = vunpack.c.l.b16 %v303
        %v390 = vpack.c.b16 %v375, %v374
        %v391 = vpack.c.b16 %v377, %v376
        %v392 = vpack.c.b16 %v379, %v378
        %v393 = vpack.c.b16 %v381, %v380
        %v394 = vpack.c.b16 %v383, %v382
        %v395 = vpack.c.b16 %v385, %v384
        %v396 = vpack.c.b16 %v387, %v386
        %v397 = vpack.c.b16 %v389, %v388
        %v438 = vunpack.c.l.b16 %v304
        %v439 = vunpack.c.h.b16 %v304
        %v440 = vunpack.c.l.b16 %v305
        %v441 = vunpack.c.h.b16 %v305
        %v442 = vunpack.c.l.b16 %v306
        %v443 = vunpack.c.h.b16 %v306
        %v444 = vunpack.c.l.b16 %v307
        %v445 = vunpack.c.h.b16 %v307
        %v446 = vunpack.c.l.b16 %v308
        %v447 = vunpack.c.h.b16 %v308
        %v448 = vunpack.c.l.b16 %v309
        %v449 = vunpack.c.h.b16 %v309
        %v450 = vunpack.c.l.b16 %v310
        %v451 = vunpack.c.h.b16 %v310
        %v452 = vunpack.c.l.b16 %v311
        %v453 = vunpack.c.h.b16 %v311
        %v454 = vunpack.c.l.b16 %v312
        %v455 = vunpack.c.h.b16 %v312
        %v456 = vunpack.c.l.b16 %v313
        %v457 = vunpack.c.h.b16 %v313
        %v458 = vunpack.c.l.b16 %v314
        %v459 = vunpack.c.h.b16 %v314
        %v460 = vunpack.c.l.b16 %v315
        %v461 = vunpack.c.h.b16 %v315
        %v462 = vunpack.c.l.b16 %v316
        %v463 = vunpack.c.h.b16 %v316
        %v464 = vunpack.c.l.b16 %v317
        %v465 = vunpack.c.h.b16 %v317
        %v466 = vunpack.c.l.b16 %v318
        %v467 = vunpack.c.h.b16 %v318
        %v468 = vunpack.c.l.b16 %v319
        %v469 = vunpack.c.h.b16 %v319
        %v470 = vunpack.c.l.b16 %v320
        %v471 = vunpack.c.h.b16 %v320
        %v472 = vunpack.c.l.b16 %v321
        %v473 = vunpack.c.h.b16 %v321
        %v474 = vunpack.c.l.b16 %v322
        %v475 = vunpack.c.h.b16 %v322
        %v476 = vunpack.c.l.b16 %v323
        %v477 = vunpack.c.h.b16 %v323
        %v478 = vunpack.c.l.b16 %v324
        %v479 = vunpack.c.h.b16 %v324
        %v480 = vunpack.c.l.b16 %v325
        %v481 = vunpack.c.h.b16 %v325
        %v482 = vunpack.c.l.b16 %v326
        %v483 = vunpack.c.h.b16 %v326
        %v484 = vunpack.c.l.b16 %v327
        %v485 = vunpack.c.h.b16 %v327
        %v486 = vunpack.c.l.b16 %v328
        %v487 = vunpack.c.h.b16 %v328
        %v488 = vunpack.c.l.b16 %v329
        %v489 = vunpack.c.h.b16 %v329
        %v490 = vunpack.c.l.b16 %v330
        %v491 = vunpack.c.h.b16 %v330
        %v492 = vunpack.c.l.b16 %v331
        %v493 = vunpack.c.h.b16 %v331
        %v494 = vunpack.c.l.b16 %v332
        %v495 = vunpack.c.h.b16 %v332
        %v496 = vunpack.c.l.b16 %v333
        %v497 = vunpack.c.h.b16 %v333
        %v498 = vunpack.c.l.b16 %v334
        %v499 = vunpack.c.h.b16 %v334
        %v500 = vunpack.c.l.b16 %v335
        %v501 = vunpack.c.h.b16 %v335
        %v502 = vpack.c.b16 %v442, %v438
        %v503 = vpack.c.b16 %v443, %v439
        %v504 = vpack.c.b16 %v444, %v440
        %v505 = vpack.c.b16 %v445, %v441
        %v506 = vpack.c.b16 %v450, %v446
        %v507 = vpack.c.b16 %v451, %v447
        %v508 = vpack.c.b16 %v452, %v448
        %v509 = vpack.c.b16 %v453, %v449
        %v510 = vpack.c.b16 %v458, %v454
        %v511 = vpack.c.b16 %v459, %v455
        %v512 = vpack.c.b16 %v460, %v456
        %v513 = vpack.c.b16 %v461, %v457
        %v514 = vpack.c.b16 %v466, %v462
        %v515 = vpack.c.b16 %v467, %v463
        %v516 = vpack.c.b16 %v468, %v464
        %v517 = vpack.c.b16 %v469, %v465
        %v518 = vpack.c.b16 %v474, %v470
        %v519 = vpack.c.b16 %v475, %v471
        %v520 = vpack.c.b16 %v476, %v472
        %v521 = vpack.c.b16 %v477, %v473
        %v522 = vpack.c.b16 %v482, %v478
        %v523 = vpack.c.b16 %v483, %v479
        %v524 = vpack.c.b16 %v484, %v480
        %v525 = vpack.c.b16 %v485, %v481
        %v526 = vpack.c.b16 %v490, %v486
        %v527 = vpack.c.b16 %v491, %v487
        %v528 = vpack.c.b16 %v492, %v488
        %v529 = vpack.c.b16 %v493, %v489
        %v530 = vpack.c.b16 %v498, %v494
        %v531 = vpack.c.b16 %v499, %v495
        %v532 = vpack.c.b16 %v500, %v496
        %v533 = vpack.c.b16 %v501, %v497
        %566 = vmatprep.subr.bf16.mxu0 %v531
        %567 = vmatpush1.bf16.msra.mxu0 %v530
        %568 = vmatprep.subr.bf16.mxu0 %v527
        %569 = vmatpush1.bf16.msra.mxu0 %v526
        %570 = vmatprep.subr.bf16.mxu0 %v523
        %571 = vmatpush1.bf16.msra.mxu0 %v522
        %572 = vmatprep.subr.bf16.mxu0 %v519
        %573 = vmatpush1.bf16.msra.mxu0 %v518
        %574 = vmatprep.subr.bf16.mxu0 %v515
        %575 = vmatpush1.bf16.msra.mxu0 %v514
        %576 = vmatprep.subr.bf16.mxu0 %v511
        %577 = vmatpush1.bf16.msra.mxu0 %v510
        %578 = vmatprep.subr.bf16.mxu0 %v507
        %579 = vmatpush1.bf16.msra.mxu0 %v506
        %580 = vmatprep.subr.bf16.mxu0 %v503
        %581 = vmatpush1.bf16.msra.mxu0 %v502
        %582 = vmatprep.subr.bf16.mxu0 0
        %583 = vmatpush2.bf16.msra.mxu0 0
        %584 = vmatprep.subr.bf16.mxu0 0
        %585 = vmatpush2.bf16.msra.mxu0 0
        %586 = vmatprep.subr.bf16.mxu0 0
        %587 = vmatpush2.bf16.msra.mxu0 0
        %588 = vmatprep.subr.bf16.mxu0 0
        %589 = vmatpush2.bf16.msra.mxu0 0
        %590 = vmatprep.subr.bf16.mxu0 0
        %591 = vmatpush2.bf16.msra.mxu0 0
        %592 = vmatprep.subr.bf16.mxu0 0
        %593 = vmatpush2.bf16.msra.mxu0 0
        %594 = vmatprep.subr.bf16.mxu0 0
        %595 = vmatpush2.bf16.msra.mxu0 0
        %596 = vmatprep.subr.bf16.mxu0 0
        %597 = vmatpush2.bf16.msra.mxu0 0
        %598 = vmatprep.mubr.bf16.mxu0 0
        %599 = vmatmul.mubr.bf16.gmra.mxu0 %v390
        %v600 = vpop.f32.mrf.mxu0
        %v601 = vadd.f32 %v341, %v600
        %v602 = vpop.f32.mrf.mxu0
        %v603 = vadd.f32 %v345, %v602
        %v604 = vpop.f32.mrf.mxu0
        %v605 = vadd.f32 %v341, %v604
        %v606 = vpop.f32.mrf.mxu0
        %v607 = vadd.f32 %v345, %v606
        %608 = vmatprep.mubr.bf16.mxu0 0
        %609 = vmatmul.mubr.bf16.gmra.mxu0 %v391
        %v610 = vpop.f32.mrf.mxu0
        %v611 = vadd.f32 %v341, %v610
        %v612 = vpop.f32.mrf.mxu0
        %v613 = vadd.f32 %v345, %v612
        %v614 = vpop.f32.mrf.mxu0
        %v615 = vadd.f32 %v341, %v614
        %v616 = vpop.f32.mrf.mxu0
        %v617 = vadd.f32 %v345, %v616
        %618 = vmatprep.mubr.bf16.mxu0 0
        %619 = vmatmul.mubr.bf16.gmra.mxu0 %v392
        %v620 = vpop.f32.mrf.mxu0
        %v621 = vadd.f32 %v341, %v620
        %v622 = vpop.f32.mrf.mxu0
        %v623 = vadd.f32 %v345, %v622
        %v624 = vpop.f32.mrf.mxu0
        %v625 = vadd.f32 %v341, %v624
        %v626 = vpop.f32.mrf.mxu0
        %v627 = vadd.f32 %v345, %v626
        %628 = vmatprep.mubr.bf16.mxu0 0
        %629 = vmatmul.mubr.bf16.gmra.mxu0 %v393
        %v630 = vpop.f32.mrf.mxu0
        %v631 = vadd.f32 %v341, %v630
        %v632 = vpop.f32.mrf.mxu0
        %v633 = vadd.f32 %v345, %v632
        %v634 = vpop.f32.mrf.mxu0
        %v635 = vadd.f32 %v341, %v634
        %v636 = vpop.f32.mrf.mxu0
        %v637 = vadd.f32 %v345, %v636
        %638 = vmatprep.mubr.bf16.mxu0 0
        %639 = vmatmul.mubr.bf16.gmra.mxu0 %v394
        %v640 = vpop.f32.mrf.mxu0
        %v641 = vadd.f32 %v341, %v640
        %v642 = vpop.f32.mrf.mxu0
        %v643 = vadd.f32 %v345, %v642
        %v644 = vpop.f32.mrf.mxu0
        %v645 = vadd.f32 %v341, %v644
        %v646 = vpop.f32.mrf.mxu0
        %v647 = vadd.f32 %v345, %v646
        %648 = vmatprep.mubr.bf16.mxu0 0
        %649 = vmatmul.mubr.bf16.gmra.mxu0 %v395
        %v650 = vpop.f32.mrf.mxu0
        %v651 = vadd.f32 %v341, %v650
        %v652 = vpop.f32.mrf.mxu0
        %v653 = vadd.f32 %v345, %v652
        %v654 = vpop.f32.mrf.mxu0
        %v655 = vadd.f32 %v341, %v654
        %v656 = vpop.f32.mrf.mxu0
        %v657 = vadd.f32 %v345, %v656
        %658 = vmatprep.mubr.bf16.mxu0 0
        %659 = vmatmul.mubr.bf16.gmra.mxu0 %v396
        %v660 = vpop.f32.mrf.mxu0
        %v661 = vadd.f32 %v341, %v660
        %v662 = vpop.f32.mrf.mxu0
        %v663 = vadd.f32 %v345, %v662
        %v664 = vpop.f32.mrf.mxu0
        %v665 = vadd.f32 %v341, %v664
        %v666 = vpop.f32.mrf.mxu0
        %v667 = vadd.f32 %v345, %v666
        %668 = vmatprep.mubr.bf16.mxu0 0
        %669 = vmatmul.mubr.bf16.gmra.mxu0 %v397
        %v670 = vpop.f32.mrf.mxu0
        %v671 = vadd.f32 %v341, %v670
        %v672 = vpop.f32.mrf.mxu0
        %v673 = vadd.f32 %v345, %v672
        %v674 = vpop.f32.mrf.mxu0
        %v675 = vadd.f32 %v341, %v674
        %v676 = vpop.f32.mrf.mxu0
        %v677 = vadd.f32 %v345, %v676
        %678 = vdwg.mxu0
        %679 = vmatprep.subr.bf16.mxu0 %v533
        %680 = vmatpush1.bf16.msra.mxu0 %v532
        %681 = vmatprep.subr.bf16.mxu0 %v529
        %682 = vmatpush1.bf16.msra.mxu0 %v528
        %683 = vmatprep.subr.bf16.mxu0 %v525
        %684 = vmatpush1.bf16.msra.mxu0 %v524
        %685 = vmatprep.subr.bf16.mxu0 %v521
        %686 = vmatpush1.bf16.msra.mxu0 %v520
        %687 = vmatprep.subr.bf16.mxu0 %v517
        %688 = vmatpush1.bf16.msra.mxu0 %v516
        %689 = vmatprep.subr.bf16.mxu0 %v513
        %690 = vmatpush1.bf16.msra.mxu0 %v512
        %691 = vmatprep.subr.bf16.mxu0 %v509
        %692 = vmatpush1.bf16.msra.mxu0 %v508
        %693 = vmatprep.subr.bf16.mxu0 %v505
        %694 = vmatpush1.bf16.msra.mxu0 %v504
        %695 = vmatprep.subr.bf16.mxu0 0
        %696 = vmatpush2.bf16.msra.mxu0 0
        %697 = vmatprep.subr.bf16.mxu0 0
        %698 = vmatpush2.bf16.msra.mxu0 0
        %699 = vmatprep.subr.bf16.mxu0 0
        %700 = vmatpush2.bf16.msra.mxu0 0
        %701 = vmatprep.subr.bf16.mxu0 0
        %702 = vmatpush2.bf16.msra.mxu0 0
        %703 = vmatprep.subr.bf16.mxu0 0
        %704 = vmatpush2.bf16.msra.mxu0 0
        %705 = vmatprep.subr.bf16.mxu0 0
        %706 = vmatpush2.bf16.msra.mxu0 0
        %707 = vmatprep.subr.bf16.mxu0 0
        %708 = vmatpush2.bf16.msra.mxu0 0
        %709 = vmatprep.subr.bf16.mxu0 0
        %710 = vmatpush2.bf16.msra.mxu0 0
        %711 = vmatprep.mubr.bf16.mxu0 0
        %712 = vmatmul.mubr.bf16.gmra.mxu0 %v390
        %v713 = vpop.f32.mrf.mxu0
        %v714 = vadd.f32 %v349, %v713
        %v715 = vpop.f32.mrf.mxu0
        %v716 = vadd.f32 %v353, %v715
        %v717 = vpop.f32.mrf.mxu0
        %v718 = vadd.f32 %v349, %v717
        %v719 = vpop.f32.mrf.mxu0
        %v720 = vadd.f32 %v353, %v719
        %721 = vmatprep.mubr.bf16.mxu0 0
        %722 = vmatmul.mubr.bf16.gmra.mxu0 %v391
        %v723 = vpop.f32.mrf.mxu0
        %v724 = vadd.f32 %v349, %v723
        %v725 = vpop.f32.mrf.mxu0
        %v726 = vadd.f32 %v353, %v725
        %v727 = vpop.f32.mrf.mxu0
        %v728 = vadd.f32 %v349, %v727
        %v729 = vpop.f32.mrf.mxu0
        %v730 = vadd.f32 %v353, %v729
        %731 = vmatprep.mubr.bf16.mxu0 0
        %732 = vmatmul.mubr.bf16.gmra.mxu0 %v392
        %v733 = vpop.f32.mrf.mxu0
        %v734 = vadd.f32 %v349, %v733
        %v735 = vpop.f32.mrf.mxu0
        %v736 = vadd.f32 %v353, %v735
        %v737 = vpop.f32.mrf.mxu0
        %v738 = vadd.f32 %v349, %v737
        %v739 = vpop.f32.mrf.mxu0
        %v740 = vadd.f32 %v353, %v739
        %741 = vmatprep.mubr.bf16.mxu0 0
        %742 = vmatmul.mubr.bf16.gmra.mxu0 %v393
        %v743 = vpop.f32.mrf.mxu0
        %v744 = vadd.f32 %v349, %v743
        %v745 = vpop.f32.mrf.mxu0
        %v746 = vadd.f32 %v353, %v745
        %v747 = vpop.f32.mrf.mxu0
        %v748 = vadd.f32 %v349, %v747
        %v749 = vpop.f32.mrf.mxu0
        %v750 = vadd.f32 %v353, %v749
        %751 = vmatprep.mubr.bf16.mxu0 0
        %752 = vmatmul.mubr.bf16.gmra.mxu0 %v394
        %v753 = vpop.f32.mrf.mxu0
        %v754 = vadd.f32 %v349, %v753
        %v755 = vpop.f32.mrf.mxu0
        %v756 = vadd.f32 %v353, %v755
        %v757 = vpop.f32.mrf.mxu0
        %v758 = vadd.f32 %v349, %v757
        %v759 = vpop.f32.mrf.mxu0
        %v760 = vadd.f32 %v353, %v759
        %761 = vmatprep.mubr.bf16.mxu0 0
        %762 = vmatmul.mubr.bf16.gmra.mxu0 %v395
        %v763 = vpop.f32.mrf.mxu0
        %v764 = vadd.f32 %v349, %v763
        %v765 = vpop.f32.mrf.mxu0
        %v766 = vadd.f32 %v353, %v765
        %v767 = vpop.f32.mrf.mxu0
        %v768 = vadd.f32 %v349, %v767
        %v769 = vpop.f32.mrf.mxu0
        %v770 = vadd.f32 %v353, %v769
        %771 = vmatprep.mubr.bf16.mxu0 0
        %772 = vmatmul.mubr.bf16.gmra.mxu0 %v396
        %v773 = vpop.f32.mrf.mxu0
        %v774 = vadd.f32 %v349, %v773
        %v775 = vpop.f32.mrf.mxu0
        %v776 = vadd.f32 %v353, %v775
        %v777 = vpop.f32.mrf.mxu0
        %v778 = vadd.f32 %v349, %v777
        %v779 = vpop.f32.mrf.mxu0
        %v780 = vadd.f32 %v353, %v779
        %781 = vmatprep.mubr.bf16.mxu0 0
        %782 = vmatmul.mubr.bf16.gmra.mxu0 %v397
        %v783 = vpop.f32.mrf.mxu0
        %v784 = vadd.f32 %v349, %v783
        %v785 = vpop.f32.mrf.mxu0
        %v786 = vadd.f32 %v353, %v785
        %v787 = vpop.f32.mrf.mxu0
        %v788 = vadd.f32 %v349, %v787
        %v789 = vpop.f32.mrf.mxu0
        %v790 = vadd.f32 %v353, %v789
        %791 = vdwg.mxu0
        %v792 = vmul.f32 %v714, 0.5
        %v793 = vmul.f32 %v716, 0.5
        %v794 = vmul.f32 %v718, 0.5
        %v795 = vmul.f32 %v720, 0.5
        %v796 = vmul.f32 %v724, 0.5
        %v797 = vmul.f32 %v726, 0.5
        %v798 = vmul.f32 %v728, 0.5
        %v799 = vmul.f32 %v730, 0.5
        %v800 = vmul.f32 %v734, 0.5
        %v801 = vmul.f32 %v736, 0.5
        %v802 = vmul.f32 %v738, 0.5
        %v803 = vmul.f32 %v740, 0.5
        %v804 = vmul.f32 %v744, 0.5
        %v805 = vmul.f32 %v746, 0.5
        %v806 = vmul.f32 %v748, 0.5
        %v807 = vmul.f32 %v750, 0.5
        %v808 = vmul.f32 %v754, 0.5
        %v809 = vmul.f32 %v756, 0.5
        %v810 = vmul.f32 %v758, 0.5
        %v811 = vmul.f32 %v760, 0.5
        %v812 = vmul.f32 %v764, 0.5
        %v813 = vmul.f32 %v766, 0.5
        %v814 = vmul.f32 %v768, 0.5
        %v815 = vmul.f32 %v770, 0.5
        %v816 = vmul.f32 %v774, 0.5
        %v817 = vmul.f32 %v776, 0.5
        %v818 = vmul.f32 %v778, 0.5
        %v819 = vmul.f32 %v780, 0.5
        %v820 = vmul.f32 %v784, 0.5
        %v821 = vmul.f32 %v786, 0.5
        %v822 = vmul.f32 %v788, 0.5
        %v823 = vmul.f32 %v790, 0.5
        %v824 = vmul.f32 %v714, 0.70710677
        %v825 = vmul.f32 %v716, 0.70710677
        %v826 = vmul.f32 %v718, 0.70710677
        %v827 = vmul.f32 %v720, 0.70710677
        %v828 = vmul.f32 %v724, 0.70710677
        %v829 = vmul.f32 %v726, 0.70710677
        %v830 = vmul.f32 %v728, 0.70710677
        %v831 = vmul.f32 %v730, 0.70710677
        %v832 = vmul.f32 %v734, 0.70710677
        %v833 = vmul.f32 %v736, 0.70710677
        %v834 = vmul.f32 %v738, 0.70710677
        %v835 = vmul.f32 %v740, 0.70710677
        %v836 = vmul.f32 %v744, 0.70710677
        %v837 = vmul.f32 %v746, 0.70710677
        %v838 = vmul.f32 %v748, 0.70710677
        %v839 = vmul.f32 %v750, 0.70710677
        %v840 = vmul.f32 %v754, 0.70710677
        %v841 = vmul.f32 %v756, 0.70710677
        %v842 = vmul.f32 %v758, 0.70710677
        %v843 = vmul.f32 %v760, 0.70710677
        %v844 = vmul.f32 %v764, 0.70710677
        %v845 = vmul.f32 %v766, 0.70710677
        %v846 = vmul.f32 %v768, 0.70710677
        %v847 = vmul.f32 %v770, 0.70710677
        %v848 = vmul.f32 %v774, 0.70710677
        %v849 = vmul.f32 %v776, 0.70710677
        %v850 = vmul.f32 %v778, 0.70710677
        %v851 = vmul.f32 %v780, 0.70710677
        %v852 = vmul.f32 %v784, 0.70710677
        %v853 = vmul.f32 %v786, 0.70710677
        %v854 = vmul.f32 %v788, 0.70710677
        %v855 = vmul.f32 %v790, 0.70710677
        %v856 = vand.u32 2147483647, %v824
        %v857 = vand.u32 2147483647, %v825
        %v858 = vand.u32 2147483647, %v826
        %v859 = vand.u32 2147483647, %v827
        %v860 = vand.u32 2147483647, %v828
        %v861 = vand.u32 2147483647, %v829
        %v862 = vand.u32 2147483647, %v830
        %v863 = vand.u32 2147483647, %v831
        %v864 = vand.u32 2147483647, %v832
        %v865 = vand.u32 2147483647, %v833
        %v866 = vand.u32 2147483647, %v834
        %v867 = vand.u32 2147483647, %v835
        %v868 = vand.u32 2147483647, %v836
        %v869 = vand.u32 2147483647, %v837
        %v870 = vand.u32 2147483647, %v838
        %v871 = vand.u32 2147483647, %v839
        %v872 = vand.u32 2147483647, %v840
        %v873 = vand.u32 2147483647, %v841
        %v874 = vand.u32 2147483647, %v842
        %v875 = vand.u32 2147483647, %v843
        %v876 = vand.u32 2147483647, %v844
        %v877 = vand.u32 2147483647, %v845
        %v878 = vand.u32 2147483647, %v846
        %v879 = vand.u32 2147483647, %v847
        %v880 = vand.u32 2147483647, %v848
        %v881 = vand.u32 2147483647, %v849
        %v882 = vand.u32 2147483647, %v850
        %v883 = vand.u32 2147483647, %v851
        %v884 = vand.u32 2147483647, %v852
        %v885 = vand.u32 2147483647, %v853
        %v886 = vand.u32 2147483647, %v854
        %v887 = vand.u32 2147483647, %v855
        %v888 = vmul.f32 %v856, 0.3275911
        %v889 = vmul.f32 %v857, 0.3275911
        %v890 = vmul.f32 %v858, 0.3275911
        %v891 = vmul.f32 %v859, 0.3275911
        %v892 = vmul.f32 %v860, 0.3275911
        %v893 = vmul.f32 %v861, 0.3275911
        %v894 = vmul.f32 %v862, 0.3275911
        %v895 = vmul.f32 %v863, 0.3275911
        %v896 = vmul.f32 %v864, 0.3275911
        %v897 = vmul.f32 %v865, 0.3275911
        %v898 = vmul.f32 %v866, 0.3275911
        %v899 = vmul.f32 %v867, 0.3275911
        %v900 = vmul.f32 %v868, 0.3275911
        %v901 = vmul.f32 %v869, 0.3275911
        %v902 = vmul.f32 %v870, 0.3275911
        %v903 = vmul.f32 %v871, 0.3275911
        %v904 = vmul.f32 %v872, 0.3275911
        %v905 = vmul.f32 %v873, 0.3275911
        %v906 = vmul.f32 %v874, 0.3275911
        %v907 = vmul.f32 %v875, 0.3275911
        %v908 = vmul.f32 %v876, 0.3275911
        %v909 = vmul.f32 %v877, 0.3275911
        %v910 = vmul.f32 %v878, 0.3275911
        %v911 = vmul.f32 %v879, 0.3275911
        %v912 = vmul.f32 %v880, 0.3275911
        %v913 = vmul.f32 %v881, 0.3275911
        %v914 = vmul.f32 %v882, 0.3275911
        %v915 = vmul.f32 %v883, 0.3275911
        %v916 = vmul.f32 %v884, 0.3275911
        %v917 = vmul.f32 %v885, 0.3275911
        %v918 = vmul.f32 %v886, 0.3275911
        %v919 = vmul.f32 %v887, 0.3275911
        %v920 = vadd.f32 %v888, 1.0
        %v921 = vadd.f32 %v889, 1.0
        %v922 = vadd.f32 %v890, 1.0
        %v923 = vadd.f32 %v891, 1.0
        %v924 = vadd.f32 %v892, 1.0
        %v925 = vadd.f32 %v893, 1.0
        %v926 = vadd.f32 %v894, 1.0
        %v927 = vadd.f32 %v895, 1.0
        %v928 = vadd.f32 %v896, 1.0
        %v929 = vadd.f32 %v897, 1.0
        %v930 = vadd.f32 %v898, 1.0
        %v931 = vadd.f32 %v899, 1.0
        %v932 = vadd.f32 %v900, 1.0
        %v933 = vadd.f32 %v901, 1.0
        %v934 = vadd.f32 %v902, 1.0
        %v935 = vadd.f32 %v903, 1.0
        %v936 = vadd.f32 %v904, 1.0
        %v937 = vadd.f32 %v905, 1.0
        %v938 = vadd.f32 %v906, 1.0
        %v939 = vadd.f32 %v907, 1.0
        %v940 = vadd.f32 %v908, 1.0
        %v941 = vadd.f32 %v909, 1.0
        %v942 = vadd.f32 %v910, 1.0
        %v943 = vadd.f32 %v911, 1.0
        %v944 = vadd.f32 %v912, 1.0
        %v945 = vadd.f32 %v913, 1.0
        %v946 = vadd.f32 %v914, 1.0
        %v947 = vadd.f32 %v915, 1.0
        %v948 = vadd.f32 %v916, 1.0
        %v949 = vadd.f32 %v917, 1.0
        %v950 = vadd.f32 %v918, 1.0
        %v951 = vadd.f32 %v919, 1.0
        %v952 = vrcp.pop %v920
        %v953 = vmul.f32 1.0, %v952
        %v954 = vrcp.pop %v921
        %v955 = vmul.f32 1.0, %v954
        %v956 = vrcp.pop %v922
        %v957 = vmul.f32 1.0, %v956
        %v958 = vrcp.pop %v923
        %v959 = vmul.f32 1.0, %v958
        %v960 = vrcp.pop %v924
        %v961 = vmul.f32 1.0, %v960
        %v962 = vrcp.pop %v925
        %v963 = vmul.f32 1.0, %v962
        %v964 = vrcp.pop %v926
        %v965 = vmul.f32 1.0, %v964
        %v966 = vrcp.pop %v927
        %v967 = vmul.f32 1.0, %v966
        %v968 = vrcp.pop %v928
        %v969 = vmul.f32 1.0, %v968
        %v970 = vrcp.pop %v929
        %v971 = vmul.f32 1.0, %v970
        %v972 = vrcp.pop %v930
        %v973 = vmul.f32 1.0, %v972
        %v974 = vrcp.pop %v931
        %v975 = vmul.f32 1.0, %v974
        %v976 = vrcp.pop %v932
        %v977 = vmul.f32 1.0, %v976
        %v978 = vrcp.pop %v933
        %v979 = vmul.f32 1.0, %v978
        %v980 = vrcp.pop %v934
        %v981 = vmul.f32 1.0, %v980
        %v982 = vrcp.pop %v935
        %v983 = vmul.f32 1.0, %v982
        %v984 = vrcp.pop %v936
        %v985 = vmul.f32 1.0, %v984
        %v986 = vrcp.pop %v937
        %v987 = vmul.f32 1.0, %v986
        %v988 = vrcp.pop %v938
        %v989 = vmul.f32 1.0, %v988
        %v990 = vrcp.pop %v939
        %v991 = vmul.f32 1.0, %v990
        %v992 = vrcp.pop %v940
        %v993 = vmul.f32 1.0, %v992
        %v994 = vrcp.pop %v941
        %v995 = vmul.f32 1.0, %v994
        %v996 = vrcp.pop %v942
        %v997 = vmul.f32 1.0, %v996
        %v998 = vrcp.pop %v943
        %v999 = vmul.f32 1.0, %v998
        %v1000 = vrcp.pop %v944
        %v1001 = vmul.f32 1.0, %v1000
        %v1002 = vrcp.pop %v945
        %v1003 = vmul.f32 1.0, %v1002
        %v1004 = vrcp.pop %v946
        %v1005 = vmul.f32 1.0, %v1004
        %v1006 = vrcp.pop %v947
        %v1007 = vmul.f32 1.0, %v1006
        %v1008 = vrcp.pop %v948
        %v1009 = vmul.f32 1.0, %v1008
        %v1010 = vrcp.pop %v949
        %v1011 = vmul.f32 1.0, %v1010
        %v1012 = vrcp.pop %v950
        %v1013 = vmul.f32 1.0, %v1012
        %v1014 = vrcp.pop %v951
        %v1015 = vmul.f32 1.0, %v1014
        %v1016 = vmul.f32 %v953, 1.0614054
        %v1017 = vmul.f32 %v955, 1.0614054
        %v1018 = vmul.f32 %v957, 1.0614054
        %v1019 = vmul.f32 %v959, 1.0614054
        %v1020 = vmul.f32 %v961, 1.0614054
        %v1021 = vmul.f32 %v963, 1.0614054
        %v1022 = vmul.f32 %v965, 1.0614054
        %v1023 = vmul.f32 %v967, 1.0614054
        %v1024 = vmul.f32 %v969, 1.0614054
        %v1025 = vmul.f32 %v971, 1.0614054
        %v1026 = vmul.f32 %v973, 1.0614054
        %v1027 = vmul.f32 %v975, 1.0614054
        %v1028 = vmul.f32 %v977, 1.0614054
        %v1029 = vmul.f32 %v979, 1.0614054
        %v1030 = vmul.f32 %v981, 1.0614054
        %v1031 = vmul.f32 %v983, 1.0614054
        %v1032 = vmul.f32 %v985, 1.0614054
        %v1033 = vmul.f32 %v987, 1.0614054
        %v1034 = vmul.f32 %v989, 1.0614054
        %v1035 = vmul.f32 %v991, 1.0614054
        %v1036 = vmul.f32 %v993, 1.0614054
        %v1037 = vmul.f32 %v995, 1.0614054
        %v1038 = vmul.f32 %v997, 1.0614054
        %v1039 = vmul.f32 %v999, 1.0614054
        %v1040 = vmul.f32 %v1001, 1.0614054
        %v1041 = vmul.f32 %v1003, 1.0614054
        %v1042 = vmul.f32 %v1005, 1.0614054
        %v1043 = vmul.f32 %v1007, 1.0614054
        %v1044 = vmul.f32 %v1009, 1.0614054
        %v1045 = vmul.f32 %v1011, 1.0614054
        %v1046 = vmul.f32 %v1013, 1.0614054
        %v1047 = vmul.f32 %v1015, 1.0614054
        %v1048 = vadd.f32 %v1016, -1.4531521
        %v1049 = vadd.f32 %v1017, -1.4531521
        %v1050 = vadd.f32 %v1018, -1.4531521
        %v1051 = vadd.f32 %v1019, -1.4531521
        %v1052 = vadd.f32 %v1020, -1.4531521
        %v1053 = vadd.f32 %v1021, -1.4531521
        %v1054 = vadd.f32 %v1022, -1.4531521
        %v1055 = vadd.f32 %v1023, -1.4531521
        %v1056 = vadd.f32 %v1024, -1.4531521
        %v1057 = vadd.f32 %v1025, -1.4531521
        %v1058 = vadd.f32 %v1026, -1.4531521
        %v1059 = vadd.f32 %v1027, -1.4531521
        %v1060 = vadd.f32 %v1028, -1.4531521
        %v1061 = vadd.f32 %v1029, -1.4531521
        %v1062 = vadd.f32 %v1030, -1.4531521
        %v1063 = vadd.f32 %v1031, -1.4531521
        %v1064 = vadd.f32 %v1032, -1.4531521
        %v1065 = vadd.f32 %v1033, -1.4531521
        %v1066 = vadd.f32 %v1034, -1.4531521
        %v1067 = vadd.f32 %v1035, -1.4531521
        %v1068 = vadd.f32 %v1036, -1.4531521
        %v1069 = vadd.f32 %v1037, -1.4531521
        %v1070 = vadd.f32 %v1038, -1.4531521
        %v1071 = vadd.f32 %v1039, -1.4531521
        %v1072 = vadd.f32 %v1040, -1.4531521
        %v1073 = vadd.f32 %v1041, -1.4531521
        %v1074 = vadd.f32 %v1042, -1.4531521
        %v1075 = vadd.f32 %v1043, -1.4531521
        %v1076 = vadd.f32 %v1044, -1.4531521
        %v1077 = vadd.f32 %v1045, -1.4531521
        %v1078 = vadd.f32 %v1046, -1.4531521
        %v1079 = vadd.f32 %v1047, -1.4531521
        %v1080 = vmul.f32 %v1048, %v953
        %v1081 = vmul.f32 %v1049, %v955
        %v1082 = vmul.f32 %v1050, %v957
        %v1083 = vmul.f32 %v1051, %v959
        %v1084 = vmul.f32 %v1052, %v961
        %v1085 = vmul.f32 %v1053, %v963
        %v1086 = vmul.f32 %v1054, %v965
        %v1087 = vmul.f32 %v1055, %v967
        %v1088 = vmul.f32 %v1056, %v969
        %v1089 = vmul.f32 %v1057, %v971
        %v1090 = vmul.f32 %v1058, %v973
        %v1091 = vmul.f32 %v1059, %v975
        %v1092 = vmul.f32 %v1060, %v977
        %v1093 = vmul.f32 %v1061, %v979
        %v1094 = vmul.f32 %v1062, %v981
        %v1095 = vmul.f32 %v1063, %v983
        %v1096 = vmul.f32 %v1064, %v985
        %v1097 = vmul.f32 %v1065, %v987
        %v1098 = vmul.f32 %v1066, %v989
        %v1099 = vmul.f32 %v1067, %v991
        %v1100 = vmul.f32 %v1068, %v993
        %v1101 = vmul.f32 %v1069, %v995
        %v1102 = vmul.f32 %v1070, %v997
        %v1103 = vmul.f32 %v1071, %v999
        %v1104 = vmul.f32 %v1072, %v1001
        %v1105 = vmul.f32 %v1073, %v1003
        %v1106 = vmul.f32 %v1074, %v1005
        %v1107 = vmul.f32 %v1075, %v1007
        %v1108 = vmul.f32 %v1076, %v1009
        %v1109 = vmul.f32 %v1077, %v1011
        %v1110 = vmul.f32 %v1078, %v1013
        %v1111 = vmul.f32 %v1079, %v1015
        %v1112 = vadd.f32 %v1080, 1.4214138
        %v1113 = vadd.f32 %v1081, 1.4214138
        %v1114 = vadd.f32 %v1082, 1.4214138
        %v1115 = vadd.f32 %v1083, 1.4214138
        %v1116 = vadd.f32 %v1084, 1.4214138
        %v1117 = vadd.f32 %v1085, 1.4214138
        %v1118 = vadd.f32 %v1086, 1.4214138
        %v1119 = vadd.f32 %v1087, 1.4214138
        %v1120 = vadd.f32 %v1088, 1.4214138
        %v1121 = vadd.f32 %v1089, 1.4214138
        %v1122 = vadd.f32 %v1090, 1.4214138
        %v1123 = vadd.f32 %v1091, 1.4214138
        %v1124 = vadd.f32 %v1092, 1.4214138
        %v1125 = vadd.f32 %v1093, 1.4214138
        %v1126 = vadd.f32 %v1094, 1.4214138
        %v1127 = vadd.f32 %v1095, 1.4214138
        %v1128 = vadd.f32 %v1096, 1.4214138
        %v1129 = vadd.f32 %v1097, 1.4214138
        %v1130 = vadd.f32 %v1098, 1.4214138
        %v1131 = vadd.f32 %v1099, 1.4214138
        %v1132 = vadd.f32 %v1100, 1.4214138
        %v1133 = vadd.f32 %v1101, 1.4214138
        %v1134 = vadd.f32 %v1102, 1.4214138
        %v1135 = vadd.f32 %v1103, 1.4214138
        %v1136 = vadd.f32 %v1104, 1.4214138
        %v1137 = vadd.f32 %v1105, 1.4214138
        %v1138 = vadd.f32 %v1106, 1.4214138
        %v1139 = vadd.f32 %v1107, 1.4214138
        %v1140 = vadd.f32 %v1108, 1.4214138
        %v1141 = vadd.f32 %v1109, 1.4214138
        %v1142 = vadd.f32 %v1110, 1.4214138
        %v1143 = vadd.f32 %v1111, 1.4214138
        %v1144 = vmul.f32 %v1112, %v953
        %v1145 = vmul.f32 %v1113, %v955
        %v1146 = vmul.f32 %v1114, %v957
        %v1147 = vmul.f32 %v1115, %v959
        %v1148 = vmul.f32 %v1116, %v961
        %v1149 = vmul.f32 %v1117, %v963
        %v1150 = vmul.f32 %v1118, %v965
        %v1151 = vmul.f32 %v1119, %v967
        %v1152 = vmul.f32 %v1120, %v969
        %v1153 = vmul.f32 %v1121, %v971
        %v1154 = vmul.f32 %v1122, %v973
        %v1155 = vmul.f32 %v1123, %v975
        %v1156 = vmul.f32 %v1124, %v977
        %v1157 = vmul.f32 %v1125, %v979
        %v1158 = vmul.f32 %v1126, %v981
        %v1159 = vmul.f32 %v1127, %v983
        %v1160 = vmul.f32 %v1128, %v985
        %v1161 = vmul.f32 %v1129, %v987
        %v1162 = vmul.f32 %v1130, %v989
        %v1163 = vmul.f32 %v1131, %v991
        %v1164 = vmul.f32 %v1132, %v993
        %v1165 = vmul.f32 %v1133, %v995
        %v1166 = vmul.f32 %v1134, %v997
        %v1167 = vmul.f32 %v1135, %v999
        %v1168 = vmul.f32 %v1136, %v1001
        %v1169 = vmul.f32 %v1137, %v1003
        %v1170 = vmul.f32 %v1138, %v1005
        %v1171 = vmul.f32 %v1139, %v1007
        %v1172 = vmul.f32 %v1140, %v1009
        %v1173 = vmul.f32 %v1141, %v1011
        %v1174 = vmul.f32 %v1142, %v1013
        %v1175 = vmul.f32 %v1143, %v1015
        %v1176 = vadd.f32 %v1144, -0.28449672
        %v1177 = vadd.f32 %v1145, -0.28449672
        %v1178 = vadd.f32 %v1146, -0.28449672
        %v1179 = vadd.f32 %v1147, -0.28449672
        %v1180 = vadd.f32 %v1148, -0.28449672
        %v1181 = vadd.f32 %v1149, -0.28449672
        %v1182 = vadd.f32 %v1150, -0.28449672
        %v1183 = vadd.f32 %v1151, -0.28449672
        %v1184 = vadd.f32 %v1152, -0.28449672
        %v1185 = vadd.f32 %v1153, -0.28449672
        %v1186 = vadd.f32 %v1154, -0.28449672
        %v1187 = vadd.f32 %v1155, -0.28449672
        %v1188 = vadd.f32 %v1156, -0.28449672
        %v1189 = vadd.f32 %v1157, -0.28449672
        %v1190 = vadd.f32 %v1158, -0.28449672
        %v1191 = vadd.f32 %v1159, -0.28449672
        %v1192 = vadd.f32 %v1160, -0.28449672
        %v1193 = vadd.f32 %v1161, -0.28449672
        %v1194 = vadd.f32 %v1162, -0.28449672
        %v1195 = vadd.f32 %v1163, -0.28449672
        %v1196 = vadd.f32 %v1164, -0.28449672
        %v1197 = vadd.f32 %v1165, -0.28449672
        %v1198 = vadd.f32 %v1166, -0.28449672
        %v1199 = vadd.f32 %v1167, -0.28449672
        %v1200 = vadd.f32 %v1168, -0.28449672
        %v1201 = vadd.f32 %v1169, -0.28449672
        %v1202 = vadd.f32 %v1170, -0.28449672
        %v1203 = vadd.f32 %v1171, -0.28449672
        %v1204 = vadd.f32 %v1172, -0.28449672
        %v1205 = vadd.f32 %v1173, -0.28449672
        %v1206 = vadd.f32 %v1174, -0.28449672
        %v1207 = vadd.f32 %v1175, -0.28449672
        %v1208 = vmul.f32 %v1176, %v953
        %v1209 = vmul.f32 %v1177, %v955
        %v1210 = vmul.f32 %v1178, %v957
        %v1211 = vmul.f32 %v1179, %v959
        %v1212 = vmul.f32 %v1180, %v961
        %v1213 = vmul.f32 %v1181, %v963
        %v1214 = vmul.f32 %v1182, %v965
        %v1215 = vmul.f32 %v1183, %v967
        %v1216 = vmul.f32 %v1184, %v969
        %v1217 = vmul.f32 %v1185, %v971
        %v1218 = vmul.f32 %v1186, %v973
        %v1219 = vmul.f32 %v1187, %v975
        %v1220 = vmul.f32 %v1188, %v977
        %v1221 = vmul.f32 %v1189, %v979
        %v1222 = vmul.f32 %v1190, %v981
        %v1223 = vmul.f32 %v1191, %v983
        %v1224 = vmul.f32 %v1192, %v985
        %v1225 = vmul.f32 %v1193, %v987
        %v1226 = vmul.f32 %v1194, %v989
        %v1227 = vmul.f32 %v1195, %v991
        %v1228 = vmul.f32 %v1196, %v993
        %v1229 = vmul.f32 %v1197, %v995
        %v1230 = vmul.f32 %v1198, %v997
        %v1231 = vmul.f32 %v1199, %v999
        %v1232 = vmul.f32 %v1200, %v1001
        %v1233 = vmul.f32 %v1201, %v1003
        %v1234 = vmul.f32 %v1202, %v1005
        %v1235 = vmul.f32 %v1203, %v1007
        %v1236 = vmul.f32 %v1204, %v1009
        %v1237 = vmul.f32 %v1205, %v1011
        %v1238 = vmul.f32 %v1206, %v1013
        %v1239 = vmul.f32 %v1207, %v1015
        %v1240 = vadd.f32 %v1208, 0.2548296
        %v1241 = vadd.f32 %v1209, 0.2548296
        %v1242 = vadd.f32 %v1210, 0.2548296
        %v1243 = vadd.f32 %v1211, 0.2548296
        %v1244 = vadd.f32 %v1212, 0.2548296
        %v1245 = vadd.f32 %v1213, 0.2548296
        %v1246 = vadd.f32 %v1214, 0.2548296
        %v1247 = vadd.f32 %v1215, 0.2548296
        %v1248 = vadd.f32 %v1216, 0.2548296
        %v1249 = vadd.f32 %v1217, 0.2548296
        %v1250 = vadd.f32 %v1218, 0.2548296
        %v1251 = vadd.f32 %v1219, 0.2548296
        %v1252 = vadd.f32 %v1220, 0.2548296
        %v1253 = vadd.f32 %v1221, 0.2548296
        %v1254 = vadd.f32 %v1222, 0.2548296
        %v1255 = vadd.f32 %v1223, 0.2548296
        %v1256 = vadd.f32 %v1224, 0.2548296
        %v1257 = vadd.f32 %v1225, 0.2548296
        %v1258 = vadd.f32 %v1226, 0.2548296
        %v1259 = vadd.f32 %v1227, 0.2548296
        %v1260 = vadd.f32 %v1228, 0.2548296
        %v1261 = vadd.f32 %v1229, 0.2548296
        %v1262 = vadd.f32 %v1230, 0.2548296
        %v1263 = vadd.f32 %v1231, 0.2548296
        %v1264 = vadd.f32 %v1232, 0.2548296
        %v1265 = vadd.f32 %v1233, 0.2548296
        %v1266 = vadd.f32 %v1234, 0.2548296
        %v1267 = vadd.f32 %v1235, 0.2548296
        %v1268 = vadd.f32 %v1236, 0.2548296
        %v1269 = vadd.f32 %v1237, 0.2548296
        %v1270 = vadd.f32 %v1238, 0.2548296
        %v1271 = vadd.f32 %v1239, 0.2548296
        %v1272 = vmul.f32 %v1240, %v953
        %v1273 = vmul.f32 %v1241, %v955
        %v1274 = vmul.f32 %v1242, %v957
        %v1275 = vmul.f32 %v1243, %v959
        %v1276 = vmul.f32 %v1244, %v961
        %v1277 = vmul.f32 %v1245, %v963
        %v1278 = vmul.f32 %v1246, %v965
        %v1279 = vmul.f32 %v1247, %v967
        %v1280 = vmul.f32 %v1248, %v969
        %v1281 = vmul.f32 %v1249, %v971
        %v1282 = vmul.f32 %v1250, %v973
        %v1283 = vmul.f32 %v1251, %v975
        %v1284 = vmul.f32 %v1252, %v977
        %v1285 = vmul.f32 %v1253, %v979
        %v1286 = vmul.f32 %v1254, %v981
        %v1287 = vmul.f32 %v1255, %v983
        %v1288 = vmul.f32 %v1256, %v985
        %v1289 = vmul.f32 %v1257, %v987
        %v1290 = vmul.f32 %v1258, %v989
        %v1291 = vmul.f32 %v1259, %v991
        %v1292 = vmul.f32 %v1260, %v993
        %v1293 = vmul.f32 %v1261, %v995
        %v1294 = vmul.f32 %v1262, %v997
        %v1295 = vmul.f32 %v1263, %v999
        %v1296 = vmul.f32 %v1264, %v1001
        %v1297 = vmul.f32 %v1265, %v1003
        %v1298 = vmul.f32 %v1266, %v1005
        %v1299 = vmul.f32 %v1267, %v1007
        %v1300 = vmul.f32 %v1268, %v1009
        %v1301 = vmul.f32 %v1269, %v1011
        %v1302 = vmul.f32 %v1270, %v1013
        %v1303 = vmul.f32 %v1271, %v1015
        %v1304 = vsub.f32 0.0, %v856
        %v1305 = vsub.f32 0.0, %v857
        %v1306 = vsub.f32 0.0, %v858
        %v1307 = vsub.f32 0.0, %v859
        %v1308 = vsub.f32 0.0, %v860
        %v1309 = vsub.f32 0.0, %v861
        %v1310 = vsub.f32 0.0, %v862
        %v1311 = vsub.f32 0.0, %v863
        %v1312 = vsub.f32 0.0, %v864
        %v1313 = vsub.f32 0.0, %v865
        %v1314 = vsub.f32 0.0, %v866
        %v1315 = vsub.f32 0.0, %v867
        %v1316 = vsub.f32 0.0, %v868
        %v1317 = vsub.f32 0.0, %v869
        %v1318 = vsub.f32 0.0, %v870
        %v1319 = vsub.f32 0.0, %v871
        %v1320 = vsub.f32 0.0, %v872
        %v1321 = vsub.f32 0.0, %v873
        %v1322 = vsub.f32 0.0, %v874
        %v1323 = vsub.f32 0.0, %v875
        %v1324 = vsub.f32 0.0, %v876
        %v1325 = vsub.f32 0.0, %v877
        %v1326 = vsub.f32 0.0, %v878
        %v1327 = vsub.f32 0.0, %v879
        %v1328 = vsub.f32 0.0, %v880
        %v1329 = vsub.f32 0.0, %v881
        %v1330 = vsub.f32 0.0, %v882
        %v1331 = vsub.f32 0.0, %v883
        %v1332 = vsub.f32 0.0, %v884
        %v1333 = vsub.f32 0.0, %v885
        %v1334 = vsub.f32 0.0, %v886
        %v1335 = vsub.f32 0.0, %v887
        %v1336 = vmul.f32 %v1304, %v856
        %v1337 = vmul.f32 %v1305, %v857
        %v1338 = vmul.f32 %v1306, %v858
        %v1339 = vmul.f32 %v1307, %v859
        %v1340 = vmul.f32 %v1308, %v860
        %v1341 = vmul.f32 %v1309, %v861
        %v1342 = vmul.f32 %v1310, %v862
        %v1343 = vmul.f32 %v1311, %v863
        %v1344 = vmul.f32 %v1312, %v864
        %v1345 = vmul.f32 %v1313, %v865
        %v1346 = vmul.f32 %v1314, %v866
        %v1347 = vmul.f32 %v1315, %v867
        %v1348 = vmul.f32 %v1316, %v868
        %v1349 = vmul.f32 %v1317, %v869
        %v1350 = vmul.f32 %v1318, %v870
        %v1351 = vmul.f32 %v1319, %v871
        %v1352 = vmul.f32 %v1320, %v872
        %v1353 = vmul.f32 %v1321, %v873
        %v1354 = vmul.f32 %v1322, %v874
        %v1355 = vmul.f32 %v1323, %v875
        %v1356 = vmul.f32 %v1324, %v876
        %v1357 = vmul.f32 %v1325, %v877
        %v1358 = vmul.f32 %v1326, %v878
        %v1359 = vmul.f32 %v1327, %v879
        %v1360 = vmul.f32 %v1328, %v880
        %v1361 = vmul.f32 %v1329, %v881
        %v1362 = vmul.f32 %v1330, %v882
        %v1363 = vmul.f32 %v1331, %v883
        %v1364 = vmul.f32 %v1332, %v884
        %v1365 = vmul.f32 %v1333, %v885
        %v1366 = vmul.f32 %v1334, %v886
        %v1367 = vmul.f32 %v1335, %v887
        %v1368 = vmul.f32 %v1336, 1.442695
        %v1369 = vpow.pop %v1368
        %v1370 = vmul.f32 %v1337, 1.442695
        %v1371 = vpow.pop %v1370
        %v1372 = vmul.f32 %v1338, 1.442695
        %v1373 = vpow.pop %v1372
        %v1374 = vmul.f32 %v1339, 1.442695
        %v1375 = vpow.pop %v1374
        %v1376 = vmul.f32 %v1340, 1.442695
        %v1377 = vpow.pop %v1376
        %v1378 = vmul.f32 %v1341, 1.442695
        %v1379 = vpow.pop %v1378
        %v1380 = vmul.f32 %v1342, 1.442695
        %v1381 = vpow.pop %v1380
        %v1382 = vmul.f32 %v1343, 1.442695
        %v1383 = vpow.pop %v1382
        %v1384 = vmul.f32 %v1344, 1.442695
        %v1385 = vpow.pop %v1384
        %v1386 = vmul.f32 %v1345, 1.442695
        %v1387 = vpow.pop %v1386
        %v1388 = vmul.f32 %v1346, 1.442695
        %v1389 = vpow.pop %v1388
        %v1390 = vmul.f32 %v1347, 1.442695
        %v1391 = vpow.pop %v1390
        %v1392 = vmul.f32 %v1348, 1.442695
        %v1393 = vpow.pop %v1392
        %v1394 = vmul.f32 %v1349, 1.442695
        %v1395 = vpow.pop %v1394
        %v1396 = vmul.f32 %v1350, 1.442695
        %v1397 = vpow.pop %v1396
        %v1398 = vmul.f32 %v1351, 1.442695
        %v1399 = vpow.pop %v1398
        %v1400 = vmul.f32 %v1352, 1.442695
        %v1401 = vpow.pop %v1400
        %v1402 = vmul.f32 %v1353, 1.442695
        %v1403 = vpow.pop %v1402
        %v1404 = vmul.f32 %v1354, 1.442695
        %v1405 = vpow.pop %v1404
        %v1406 = vmul.f32 %v1355, 1.442695
        %v1407 = vpow.pop %v1406
        %v1408 = vmul.f32 %v1356, 1.442695
        %v1409 = vpow.pop %v1408
        %v1410 = vmul.f32 %v1357, 1.442695
        %v1411 = vpow.pop %v1410
        %v1412 = vmul.f32 %v1358, 1.442695
        %v1413 = vpow.pop %v1412
        %v1414 = vmul.f32 %v1359, 1.442695
        %v1415 = vpow.pop %v1414
        %v1416 = vmul.f32 %v1360, 1.442695
        %v1417 = vpow.pop %v1416
        %v1418 = vmul.f32 %v1361, 1.442695
        %v1419 = vpow.pop %v1418
        %v1420 = vmul.f32 %v1362, 1.442695
        %v1421 = vpow.pop %v1420
        %v1422 = vmul.f32 %v1363, 1.442695
        %v1423 = vpow.pop %v1422
        %v1424 = vmul.f32 %v1364, 1.442695
        %v1425 = vpow.pop %v1424
        %v1426 = vmul.f32 %v1365, 1.442695
        %v1427 = vpow.pop %v1426
        %v1428 = vmul.f32 %v1366, 1.442695
        %v1429 = vpow.pop %v1428
        %v1430 = vmul.f32 %v1367, 1.442695
        %v1431 = vpow.pop %v1430
        %v1432 = vmul.f32 %v1272, %v1369
        %v1433 = vmul.f32 %v1273, %v1371
        %v1434 = vmul.f32 %v1274, %v1373
        %v1435 = vmul.f32 %v1275, %v1375
        %v1436 = vmul.f32 %v1276, %v1377
        %v1437 = vmul.f32 %v1277, %v1379
        %v1438 = vmul.f32 %v1278, %v1381
        %v1439 = vmul.f32 %v1279, %v1383
        %v1440 = vmul.f32 %v1280, %v1385
        %v1441 = vmul.f32 %v1281, %v1387
        %v1442 = vmul.f32 %v1282, %v1389
        %v1443 = vmul.f32 %v1283, %v1391
        %v1444 = vmul.f32 %v1284, %v1393
        %v1445 = vmul.f32 %v1285, %v1395
        %v1446 = vmul.f32 %v1286, %v1397
        %v1447 = vmul.f32 %v1287, %v1399
        %v1448 = vmul.f32 %v1288, %v1401
        %v1449 = vmul.f32 %v1289, %v1403
        %v1450 = vmul.f32 %v1290, %v1405
        %v1451 = vmul.f32 %v1291, %v1407
        %v1452 = vmul.f32 %v1292, %v1409
        %v1453 = vmul.f32 %v1293, %v1411
        %v1454 = vmul.f32 %v1294, %v1413
        %v1455 = vmul.f32 %v1295, %v1415
        %v1456 = vmul.f32 %v1296, %v1417
        %v1457 = vmul.f32 %v1297, %v1419
        %v1458 = vmul.f32 %v1298, %v1421
        %v1459 = vmul.f32 %v1299, %v1423
        %v1460 = vmul.f32 %v1300, %v1425
        %v1461 = vmul.f32 %v1301, %v1427
        %v1462 = vmul.f32 %v1302, %v1429
        %v1463 = vmul.f32 %v1303, %v1431
        %v1464 = vsub.f32 1.0, %v1432
        %v1465 = vsub.f32 1.0, %v1433
        %v1466 = vsub.f32 1.0, %v1434
        %v1467 = vsub.f32 1.0, %v1435
        %v1468 = vsub.f32 1.0, %v1436
        %v1469 = vsub.f32 1.0, %v1437
        %v1470 = vsub.f32 1.0, %v1438
        %v1471 = vsub.f32 1.0, %v1439
        %v1472 = vsub.f32 1.0, %v1440
        %v1473 = vsub.f32 1.0, %v1441
        %v1474 = vsub.f32 1.0, %v1442
        %v1475 = vsub.f32 1.0, %v1443
        %v1476 = vsub.f32 1.0, %v1444
        %v1477 = vsub.f32 1.0, %v1445
        %v1478 = vsub.f32 1.0, %v1446
        %v1479 = vsub.f32 1.0, %v1447
        %v1480 = vsub.f32 1.0, %v1448
        %v1481 = vsub.f32 1.0, %v1449
        %v1482 = vsub.f32 1.0, %v1450
        %v1483 = vsub.f32 1.0, %v1451
        %v1484 = vsub.f32 1.0, %v1452
        %v1485 = vsub.f32 1.0, %v1453
        %v1486 = vsub.f32 1.0, %v1454
        %v1487 = vsub.f32 1.0, %v1455
        %v1488 = vsub.f32 1.0, %v1456
        %v1489 = vsub.f32 1.0, %v1457
        %v1490 = vsub.f32 1.0, %v1458
        %v1491 = vsub.f32 1.0, %v1459
        %v1492 = vsub.f32 1.0, %v1460
        %v1493 = vsub.f32 1.0, %v1461
        %v1494 = vsub.f32 1.0, %v1462
        %v1495 = vsub.f32 1.0, %v1463
        %vm1496 = vcmp.ge.f32.partialorder %v824, 0.0
        %vm1497 = vcmp.ge.f32.partialorder %v825, 0.0
        %vm1498 = vcmp.ge.f32.partialorder %v826, 0.0
        %vm1499 = vcmp.ge.f32.partialorder %v827, 0.0
        %vm1500 = vcmp.ge.f32.partialorder %v828, 0.0
        %vm1501 = vcmp.ge.f32.partialorder %v829, 0.0
        %vm1502 = vcmp.ge.f32.partialorder %v830, 0.0
        %vm1503 = vcmp.ge.f32.partialorder %v831, 0.0
        %vm1504 = vcmp.ge.f32.partialorder %v832, 0.0
        %vm1505 = vcmp.ge.f32.partialorder %v833, 0.0
        %vm1506 = vcmp.ge.f32.partialorder %v834, 0.0
        %vm1507 = vcmp.ge.f32.partialorder %v835, 0.0
        %vm1508 = vcmp.ge.f32.partialorder %v836, 0.0
        %vm1509 = vcmp.ge.f32.partialorder %v837, 0.0
        %vm1510 = vcmp.ge.f32.partialorder %v838, 0.0
        %vm1511 = vcmp.ge.f32.partialorder %v839, 0.0
        %vm1512 = vcmp.ge.f32.partialorder %v840, 0.0
        %vm1513 = vcmp.ge.f32.partialorder %v841, 0.0
        %vm1514 = vcmp.ge.f32.partialorder %v842, 0.0
        %vm1515 = vcmp.ge.f32.partialorder %v843, 0.0
        %vm1516 = vcmp.ge.f32.partialorder %v844, 0.0
        %vm1517 = vcmp.ge.f32.partialorder %v845, 0.0
        %vm1518 = vcmp.ge.f32.partialorder %v846, 0.0
        %vm1519 = vcmp.ge.f32.partialorder %v847, 0.0
        %vm1520 = vcmp.ge.f32.partialorder %v848, 0.0
        %vm1521 = vcmp.ge.f32.partialorder %v849, 0.0
        %vm1522 = vcmp.ge.f32.partialorder %v850, 0.0
        %vm1523 = vcmp.ge.f32.partialorder %v851, 0.0
        %vm1524 = vcmp.ge.f32.partialorder %v852, 0.0
        %vm1525 = vcmp.ge.f32.partialorder %v853, 0.0
        %vm1526 = vcmp.ge.f32.partialorder %v854, 0.0
        %vm1527 = vcmp.ge.f32.partialorder %v855, 0.0
        %v1528 = vsub.f32 0.0, %v1464
        %v1529 = vsub.f32 0.0, %v1465
        %v1530 = vsub.f32 0.0, %v1466
        %v1531 = vsub.f32 0.0, %v1467
        %v1532 = vsub.f32 0.0, %v1468
        %v1533 = vsub.f32 0.0, %v1469
        %v1534 = vsub.f32 0.0, %v1470
        %v1535 = vsub.f32 0.0, %v1471
        %v1536 = vsub.f32 0.0, %v1472
        %v1537 = vsub.f32 0.0, %v1473
        %v1538 = vsub.f32 0.0, %v1474
        %v1539 = vsub.f32 0.0, %v1475
        %v1540 = vsub.f32 0.0, %v1476
        %v1541 = vsub.f32 0.0, %v1477
        %v1542 = vsub.f32 0.0, %v1478
        %v1543 = vsub.f32 0.0, %v1479
        %v1544 = vsub.f32 0.0, %v1480
        %v1545 = vsub.f32 0.0, %v1481
        %v1546 = vsub.f32 0.0, %v1482
        %v1547 = vsub.f32 0.0, %v1483
        %v1548 = vsub.f32 0.0, %v1484
        %v1549 = vsub.f32 0.0, %v1485
        %v1550 = vsub.f32 0.0, %v1486
        %v1551 = vsub.f32 0.0, %v1487
        %v1552 = vsub.f32 0.0, %v1488
        %v1553 = vsub.f32 0.0, %v1489
        %v1554 = vsub.f32 0.0, %v1490
        %v1555 = vsub.f32 0.0, %v1491
        %v1556 = vsub.f32 0.0, %v1492
        %v1557 = vsub.f32 0.0, %v1493
        %v1558 = vsub.f32 0.0, %v1494
        %v1559 = vsub.f32 0.0, %v1495
        %v1560 = vsel %vm1496, %v1464, %v1528
        %v1561 = vsel %vm1497, %v1465, %v1529
        %v1562 = vsel %vm1498, %v1466, %v1530
        %v1563 = vsel %vm1499, %v1467, %v1531
        %v1564 = vsel %vm1500, %v1468, %v1532
        %v1565 = vsel %vm1501, %v1469, %v1533
        %v1566 = vsel %vm1502, %v1470, %v1534
        %v1567 = vsel %vm1503, %v1471, %v1535
        %v1568 = vsel %vm1504, %v1472, %v1536
        %v1569 = vsel %vm1505, %v1473, %v1537
        %v1570 = vsel %vm1506, %v1474, %v1538
        %v1571 = vsel %vm1507, %v1475, %v1539
        %v1572 = vsel %vm1508, %v1476, %v1540
        %v1573 = vsel %vm1509, %v1477, %v1541
        %v1574 = vsel %vm1510, %v1478, %v1542
        %v1575 = vsel %vm1511, %v1479, %v1543
        %v1576 = vsel %vm1512, %v1480, %v1544
        %v1577 = vsel %vm1513, %v1481, %v1545
        %v1578 = vsel %vm1514, %v1482, %v1546
        %v1579 = vsel %vm1515, %v1483, %v1547
        %v1580 = vsel %vm1516, %v1484, %v1548
        %v1581 = vsel %vm1517, %v1485, %v1549
        %v1582 = vsel %vm1518, %v1486, %v1550
        %v1583 = vsel %vm1519, %v1487, %v1551
        %v1584 = vsel %vm1520, %v1488, %v1552
        %v1585 = vsel %vm1521, %v1489, %v1553
        %v1586 = vsel %vm1522, %v1490, %v1554
        %v1587 = vsel %vm1523, %v1491, %v1555
        %v1588 = vsel %vm1524, %v1492, %v1556
        %v1589 = vsel %vm1525, %v1493, %v1557
        %v1590 = vsel %vm1526, %v1494, %v1558
        %v1591 = vsel %vm1527, %v1495, %v1559
        %v1592 = vadd.f32 %v1560, 1.0
        %v1593 = vadd.f32 %v1561, 1.0
        %v1594 = vadd.f32 %v1562, 1.0
        %v1595 = vadd.f32 %v1563, 1.0
        %v1596 = vadd.f32 %v1564, 1.0
        %v1597 = vadd.f32 %v1565, 1.0
        %v1598 = vadd.f32 %v1566, 1.0
        %v1599 = vadd.f32 %v1567, 1.0
        %v1600 = vadd.f32 %v1568, 1.0
        %v1601 = vadd.f32 %v1569, 1.0
        %v1602 = vadd.f32 %v1570, 1.0
        %v1603 = vadd.f32 %v1571, 1.0
        %v1604 = vadd.f32 %v1572, 1.0
        %v1605 = vadd.f32 %v1573, 1.0
        %v1606 = vadd.f32 %v1574, 1.0
        %v1607 = vadd.f32 %v1575, 1.0
        %v1608 = vadd.f32 %v1576, 1.0
        %v1609 = vadd.f32 %v1577, 1.0
        %v1610 = vadd.f32 %v1578, 1.0
        %v1611 = vadd.f32 %v1579, 1.0
        %v1612 = vadd.f32 %v1580, 1.0
        %v1613 = vadd.f32 %v1581, 1.0
        %v1614 = vadd.f32 %v1582, 1.0
        %v1615 = vadd.f32 %v1583, 1.0
        %v1616 = vadd.f32 %v1584, 1.0
        %v1617 = vadd.f32 %v1585, 1.0
        %v1618 = vadd.f32 %v1586, 1.0
        %v1619 = vadd.f32 %v1587, 1.0
        %v1620 = vadd.f32 %v1588, 1.0
        %v1621 = vadd.f32 %v1589, 1.0
        %v1622 = vadd.f32 %v1590, 1.0
        %v1623 = vadd.f32 %v1591, 1.0
        %v1624 = vmul.f32 %v792, %v1592
        %v1625 = vmul.f32 %v793, %v1593
        %v1626 = vmul.f32 %v794, %v1594
        %v1627 = vmul.f32 %v795, %v1595
        %v1628 = vmul.f32 %v796, %v1596
        %v1629 = vmul.f32 %v797, %v1597
        %v1630 = vmul.f32 %v798, %v1598
        %v1631 = vmul.f32 %v799, %v1599
        %v1632 = vmul.f32 %v800, %v1600
        %v1633 = vmul.f32 %v801, %v1601
        %v1634 = vmul.f32 %v802, %v1602
        %v1635 = vmul.f32 %v803, %v1603
        %v1636 = vmul.f32 %v804, %v1604
        %v1637 = vmul.f32 %v805, %v1605
        %v1638 = vmul.f32 %v806, %v1606
        %v1639 = vmul.f32 %v807, %v1607
        %v1640 = vmul.f32 %v808, %v1608
        %v1641 = vmul.f32 %v809, %v1609
        %v1642 = vmul.f32 %v810, %v1610
        %v1643 = vmul.f32 %v811, %v1611
        %v1644 = vmul.f32 %v812, %v1612
        %v1645 = vmul.f32 %v813, %v1613
        %v1646 = vmul.f32 %v814, %v1614
        %v1647 = vmul.f32 %v815, %v1615
        %v1648 = vmul.f32 %v816, %v1616
        %v1649 = vmul.f32 %v817, %v1617
        %v1650 = vmul.f32 %v818, %v1618
        %v1651 = vmul.f32 %v819, %v1619
        %v1652 = vmul.f32 %v820, %v1620
        %v1653 = vmul.f32 %v821, %v1621
        %v1654 = vmul.f32 %v822, %v1622
        %v1655 = vmul.f32 %v823, %v1623
        %v1656 = vmul.f32 %v1624, %v601
        %v1657 = vmul.f32 %v1625, %v603
        %v1658 = vmul.f32 %v1626, %v605
        %v1659 = vmul.f32 %v1627, %v607
        %v1660 = vmul.f32 %v1628, %v611
        %v1661 = vmul.f32 %v1629, %v613
        %v1662 = vmul.f32 %v1630, %v615
        %v1663 = vmul.f32 %v1631, %v617
        %v1664 = vmul.f32 %v1632, %v621
        %v1665 = vmul.f32 %v1633, %v623
        %v1666 = vmul.f32 %v1634, %v625
        %v1667 = vmul.f32 %v1635, %v627
        %v1668 = vmul.f32 %v1636, %v631
        %v1669 = vmul.f32 %v1637, %v633
        %v1670 = vmul.f32 %v1638, %v635
        %v1671 = vmul.f32 %v1639, %v637
        %v1672 = vmul.f32 %v1640, %v641
        %v1673 = vmul.f32 %v1641, %v643
        %v1674 = vmul.f32 %v1642, %v645
        %v1675 = vmul.f32 %v1643, %v647
        %v1676 = vmul.f32 %v1644, %v651
        %v1677 = vmul.f32 %v1645, %v653
        %v1678 = vmul.f32 %v1646, %v655
        %v1679 = vmul.f32 %v1647, %v657
        %v1680 = vmul.f32 %v1648, %v661
        %v1681 = vmul.f32 %v1649, %v663
        %v1682 = vmul.f32 %v1650, %v665
        %v1683 = vmul.f32 %v1651, %v667
        %v1684 = vmul.f32 %v1652, %v671
        %v1685 = vmul.f32 %v1653, %v673
        %v1686 = vmul.f32 %v1654, %v675
        %v1687 = vmul.f32 %v1655, %v677
        %v1688 = vpack.c.bf16 %v1658, %v1656
        %v1689 = vpack.c.bf16 %v1659, %v1657
        %v1690 = vpack.c.bf16 %v1662, %v1660
        %v1691 = vpack.c.bf16 %v1663, %v1661
        %v1692 = vpack.c.bf16 %v1666, %v1664
        %v1693 = vpack.c.bf16 %v1667, %v1665
        %v1694 = vpack.c.bf16 %v1670, %v1668
        %v1695 = vpack.c.bf16 %v1671, %v1669
        %v1696 = vpack.c.bf16 %v1674, %v1672
        %v1697 = vpack.c.bf16 %v1675, %v1673
        %v1698 = vpack.c.bf16 %v1678, %v1676
        %v1699 = vpack.c.bf16 %v1679, %v1677
        %v1700 = vpack.c.bf16 %v1682, %v1680
        %v1701 = vpack.c.bf16 %v1683, %v1681
        %v1702 = vpack.c.bf16 %v1686, %v1684
        %v1703 = vpack.c.bf16 %v1687, %v1685
        %v1704 = vld [vmem:[#allocation8] sm:$0xf]
        %v1705 = vld [vmem:[#allocation8 + $0x4] sm:$0xf]
        %v1706 = vld [vmem:[#allocation8 + $0x8] sm:$0xf]
        %v1707 = vld [vmem:[#allocation8 + $0xc] sm:$0xf]
        %v1708 = vld [vmem:[#allocation8 + $0x10] sm:$0xf]
        %v1709 = vld [vmem:[#allocation8 + $0x14] sm:$0xf]
        %v1710 = vld [vmem:[#allocation8 + $0x18] sm:$0xf]
        %v1711 = vld [vmem:[#allocation8 + $0x1c] sm:$0xf]
        %v1712 = vld [vmem:[#allocation8 + $0x20] sm:$0xf]
        %v1713 = vld [vmem:[#allocation8 + $0x24] sm:$0xf]
        %v1714 = vld [vmem:[#allocation8 + $0x28] sm:$0xf]
        %v1715 = vld [vmem:[#allocation8 + $0x2c] sm:$0xf]
        %v1716 = vld [vmem:[#allocation8 + $0x30] sm:$0xf]
        %v1717 = vld [vmem:[#allocation8 + $0x34] sm:$0xf]
        %v1718 = vld [vmem:[#allocation8 + $0x38] sm:$0xf]
        %v1719 = vld [vmem:[#allocation8 + $0x3c] sm:$0xf]
        %v1720 = vld [vmem:[#allocation8 + $0x40] sm:$0xf]
        %v1721 = vld [vmem:[#allocation8 + $0x44] sm:$0xf]
        %v1722 = vld [vmem:[#allocation8 + $0x48] sm:$0xf]
        %v1723 = vld [vmem:[#allocation8 + $0x4c] sm:$0xf]
        %v1724 = vld [vmem:[#allocation8 + $0x50] sm:$0xf]
        %v1725 = vld [vmem:[#allocation8 + $0x54] sm:$0xf]
        %v1726 = vld [vmem:[#allocation8 + $0x58] sm:$0xf]
        %v1727 = vld [vmem:[#allocation8 + $0x5c] sm:$0xf]
        %v1728 = vld [vmem:[#allocation8 + $0x60] sm:$0xf]
        %v1729 = vld [vmem:[#allocation8 + $0x64] sm:$0xf]
        %v1730 = vld [vmem:[#allocation8 + $0x68] sm:$0xf]
        %v1731 = vld [vmem:[#allocation8 + $0x6c] sm:$0xf]
        %v1732 = vld [vmem:[#allocation8 + $0x70] sm:$0xf]
        %v1733 = vld [vmem:[#allocation8 + $0x74] sm:$0xf]
        %v1734 = vld [vmem:[#allocation8 + $0x78] sm:$0xf]
        %v1735 = vld [vmem:[#allocation8 + $0x7c] sm:$0xf]
        %v1736 = vld [vmem:[%s4] sm:$0x1]
        %v1738 = vlaneseq
        %v1739 = vshrl.u32 %v1738, 7
        %v1740 = vsub.s32 0, %v1739
        %v1741 = vrot.slane %v1736, %v1740
        %v1775 = vunpack.c.l.b16 %v1704
        %v1776 = vunpack.c.l.b16 %v1705
        %v1777 = vunpack.c.l.b16 %v1706
        %v1778 = vunpack.c.l.b16 %v1707
        %v1779 = vunpack.c.l.b16 %v1708
        %v1780 = vunpack.c.l.b16 %v1709
        %v1781 = vunpack.c.l.b16 %v1710
        %v1782 = vunpack.c.l.b16 %v1711
        %v1783 = vunpack.c.l.b16 %v1712
        %v1784 = vunpack.c.l.b16 %v1713
        %v1785 = vunpack.c.l.b16 %v1714
        %v1786 = vunpack.c.l.b16 %v1715
        %v1787 = vunpack.c.l.b16 %v1716
        %v1788 = vunpack.c.l.b16 %v1717
        %v1789 = vunpack.c.l.b16 %v1718
        %v1790 = vunpack.c.l.b16 %v1719
        %v1791 = vunpack.c.l.b16 %v1720
        %v1792 = vunpack.c.l.b16 %v1721
        %v1793 = vunpack.c.l.b16 %v1722
        %v1794 = vunpack.c.l.b16 %v1723
        %v1795 = vunpack.c.l.b16 %v1724
        %v1796 = vunpack.c.l.b16 %v1725
        %v1797 = vunpack.c.l.b16 %v1726
        %v1798 = vunpack.c.l.b16 %v1727
        %v1799 = vunpack.c.l.b16 %v1728
        %v1800 = vunpack.c.l.b16 %v1729
        %v1801 = vunpack.c.l.b16 %v1730
        %v1802 = vunpack.c.l.b16 %v1731
        %v1803 = vunpack.c.l.b16 %v1732
        %v1804 = vunpack.c.l.b16 %v1733
        %v1805 = vunpack.c.l.b16 %v1734
        %v1806 = vunpack.c.l.b16 %v1735
        %v1807 = vpack.c.b16 %v1776, %v1775
        %v1808 = vpack.c.b16 %v1778, %v1777
        %v1809 = vpack.c.b16 %v1780, %v1779
        %v1810 = vpack.c.b16 %v1782, %v1781
        %v1811 = vpack.c.b16 %v1784, %v1783
        %v1812 = vpack.c.b16 %v1786, %v1785
        %v1813 = vpack.c.b16 %v1788, %v1787
        %v1814 = vpack.c.b16 %v1790, %v1789
        %v1815 = vpack.c.b16 %v1792, %v1791
        %v1816 = vpack.c.b16 %v1794, %v1793
        %v1817 = vpack.c.b16 %v1796, %v1795
        %v1818 = vpack.c.b16 %v1798, %v1797
        %v1819 = vpack.c.b16 %v1800, %v1799
        %v1820 = vpack.c.b16 %v1802, %v1801
        %v1821 = vpack.c.b16 %v1804, %v1803
        %v1822 = vpack.c.b16 %v1806, %v1805
        %1839 = vmatprep.subr.bf16.mxu0 0
        %1840 = vmatpush1.bf16.msra.mxu0 %v1814
        %1841 = vmatprep.subr.bf16.mxu0 0
        %1842 = vmatpush1.bf16.msra.mxu0 %v1813
        %1843 = vmatprep.subr.bf16.mxu0 0
        %1844 = vmatpush1.bf16.msra.mxu0 %v1812
        %1845 = vmatprep.subr.bf16.mxu0 0
        %1846 = vmatpush1.bf16.msra.mxu0 %v1811
        %1847 = vmatprep.subr.bf16.mxu0 0
        %1848 = vmatpush1.bf16.msra.mxu0 %v1810
        %1849 = vmatprep.subr.bf16.mxu0 0
        %1850 = vmatpush1.bf16.msra.mxu0 %v1809
        %1851 = vmatprep.subr.bf16.mxu0 0
        %1852 = vmatpush1.bf16.msra.mxu0 %v1808
        %1853 = vmatprep.subr.bf16.mxu0 0
        %1854 = vmatpush1.bf16.msra.mxu0 %v1807
        %1855 = vmatprep.subr.bf16.mxu0 0
        %1856 = vmatpush2.bf16.msra.mxu0 %v1822
        %1857 = vmatprep.subr.bf16.mxu0 0
        %1858 = vmatpush2.bf16.msra.mxu0 %v1821
        %1859 = vmatprep.subr.bf16.mxu0 0
        %1860 = vmatpush2.bf16.msra.mxu0 %v1820
        %1861 = vmatprep.subr.bf16.mxu0 0
        %1862 = vmatpush2.bf16.msra.mxu0 %v1819
        %1863 = vmatprep.subr.bf16.mxu0 0
        %1864 = vmatpush2.bf16.msra.mxu0 %v1818
        %1865 = vmatprep.subr.bf16.mxu0 0
        %1866 = vmatpush2.bf16.msra.mxu0 %v1817
        %1867 = vmatprep.subr.bf16.mxu0 0
        %1868 = vmatpush2.bf16.msra.mxu0 %v1816
        %1869 = vmatprep.subr.bf16.mxu0 0
        %1870 = vmatpush2.bf16.msra.mxu0 %v1815
        %1871 = vmatprep.mubr.bf16.mxu0 %v1689
        %1872 = vmatmul.mubr.bf16.gmra.mxu0 %v1688
        %v1873 = vpop.f32.mrf.mxu0
        %v1874 = vadd.f32 %v1741, %v1873
        %v1875 = vpop.f32.mrf.mxu0
        %v1876 = vpop.f32.mrf.mxu0
        %v1877 = vadd.f32 %v1741, %v1876
        %v1878 = vpop.f32.mrf.mxu0
        %1879 = vmatprep.mubr.bf16.mxu0 %v1691
        %1880 = vmatmul.mubr.bf16.gmra.mxu0 %v1690
        %v1881 = vpop.f32.mrf.mxu0
        %v1882 = vadd.f32 %v1741, %v1881
        %v1883 = vpop.f32.mrf.mxu0
        %v1884 = vpop.f32.mrf.mxu0
        %v1885 = vadd.f32 %v1741, %v1884
        %v1886 = vpop.f32.mrf.mxu0
        %1887 = vmatprep.mubr.bf16.mxu0 %v1693
        %1888 = vmatmul.mubr.bf16.gmra.mxu0 %v1692
        %v1889 = vpop.f32.mrf.mxu0
        %v1890 = vadd.f32 %v1741, %v1889
        %v1891 = vpop.f32.mrf.mxu0
        %v1892 = vpop.f32.mrf.mxu0
        %v1893 = vadd.f32 %v1741, %v1892
        %v1894 = vpop.f32.mrf.mxu0
        %1895 = vmatprep.mubr.bf16.mxu0 %v1695
        %1896 = vmatmul.mubr.bf16.gmra.mxu0 %v1694
        %v1897 = vpop.f32.mrf.mxu0
        %v1898 = vadd.f32 %v1741, %v1897
        %v1899 = vpop.f32.mrf.mxu0
        %v1900 = vpop.f32.mrf.mxu0
        %v1901 = vadd.f32 %v1741, %v1900
        %v1902 = vpop.f32.mrf.mxu0
        %1903 = vmatprep.mubr.bf16.mxu0 %v1697
        %1904 = vmatmul.mubr.bf16.gmra.mxu0 %v1696
        %v1905 = vpop.f32.mrf.mxu0
        %v1906 = vadd.f32 %v1741, %v1905
        %v1907 = vpop.f32.mrf.mxu0
        %v1908 = vpop.f32.mrf.mxu0
        %v1909 = vadd.f32 %v1741, %v1908
        %v1910 = vpop.f32.mrf.mxu0
        %1911 = vmatprep.mubr.bf16.mxu0 %v1699
        %1912 = vmatmul.mubr.bf16.gmra.mxu0 %v1698
        %v1913 = vpop.f32.mrf.mxu0
        %v1914 = vadd.f32 %v1741, %v1913
        %v1915 = vpop.f32.mrf.mxu0
        %v1916 = vpop.f32.mrf.mxu0
        %v1917 = vadd.f32 %v1741, %v1916
        %v1918 = vpop.f32.mrf.mxu0
        %1919 = vmatprep.mubr.bf16.mxu0 %v1701
        %1920 = vmatmul.mubr.bf16.gmra.mxu0 %v1700
        %v1921 = vpop.f32.mrf.mxu0
        %v1922 = vadd.f32 %v1741, %v1921
        %v1923 = vpop.f32.mrf.mxu0
        %v1924 = vpop.f32.mrf.mxu0
        %v1925 = vadd.f32 %v1741, %v1924
        %v1926 = vpop.f32.mrf.mxu0
        %1927 = vmatprep.mubr.bf16.mxu0 %v1703
        %1928 = vmatmul.mubr.bf16.gmra.mxu0 %v1702
        %v1929 = vpop.f32.mrf.mxu0
        %v1930 = vadd.f32 %v1741, %v1929
        %v1931 = vpop.f32.mrf.mxu0
        %v1932 = vpop.f32.mrf.mxu0
        %v1933 = vadd.f32 %v1741, %v1932
        %v1934 = vpop.f32.mrf.mxu0
        %1935 = vdwg.mxu0
        %1936 = vst [vmem:[%s284] sm:$0xff] %v1874
        %1937 = vst [vmem:[%s284 + $0x8] sm:$0xff] %v1877
        %1938 = vst [vmem:[%s284 + $0x10] sm:$0xff] %v1882
        %1939 = vst [vmem:[%s284 + $0x18] sm:$0xff] %v1885
        %1940 = vst [vmem:[%s284 + $0x20] sm:$0xff] %v1890
        %1941 = vst [vmem:[%s284 + $0x28] sm:$0xff] %v1893
        %1942 = vst [vmem:[%s284 + $0x30] sm:$0xff] %v1898
        %1943 = vst [vmem:[%s284 + $0x38] sm:$0xff] %v1901
        %1944 = vst [vmem:[%s284 + $0x40] sm:$0xff] %v1906
        %1945 = vst [vmem:[%s284 + $0x48] sm:$0xff] %v1909
        %1946 = vst [vmem:[%s284 + $0x50] sm:$0xff] %v1914
        %1947 = vst [vmem:[%s284 + $0x58] sm:$0xff] %v1917
        %1948 = vst [vmem:[%s284 + $0x60] sm:$0xff] %v1922
        %1949 = vst [vmem:[%s284 + $0x68] sm:$0xff] %v1925
        %1950 = vst [vmem:[%s284 + $0x70] sm:$0xff] %v1930
        %1951 = vst [vmem:[%s284 + $0x78] sm:$0xff] %v1933
        %s1952 = sand.u32 %s142, 1
        %s1953 = scalar_lea.sflag [#allocation4], %s1952
        %s1954 = sand.u32 %s142, 1
        %s1955 = smul.addr %s1954, 128
        %s1956 = scalar_lea.vmem [#allocation10], %s1955
        // Predicated region
        $region57: #{tpu_custom_call.1} parent=39 // pred_check
          %p1957 = pneg %p152
        $region58: #{tpu_custom_call.1} parent=39 // pred_check_branch
          %1959 = sbr.rel (%p1957) target = $region60
        $region59: #{tpu_custom_call.1} parent=39 // pred_region
          %s1960 = smul.u32 16, %s24
          %s1962 = ssub.s32 2048, 2048
          %1963 = vsyncadd %s1953, %s1962
          %s1964 = smul.addr %s1960, 128
          %s1965 = scalar_lea.hbm %s5, %s1964
          %s1966 = sshll.u32 %s1956, 4
          %s1967 = int_to_ptr.vmem [resolvable:$true] %s1966
          %1972 = dma.vmem_to_hbm [thread:$0]  %s1967, 2048, %s1965, %s1953, 128, 128, 8
        $region60: #{tpu_custom_call.1} parent=39 // pred_fallthru
          _
      $region40: #{tpu_custom_call.1} parent=5 // pred_fallthru
        _
      %p1973 = scmp.le.s32.totalorder 2, %s19
      // Predicated region
      $region61: #{tpu_custom_call.1} parent=5 // pred_check
        %p1974 = pneg %p1973
      $region62: #{tpu_custom_call.1} parent=5 // pred_check_branch
        %1976 = sbr.rel (%p1974) target = $region64
      $region63: #{tpu_custom_call.1} parent=5 // pred_region
        %s1977 = ssub.s32 %s19, 2
        // Predicated region
        $region65: #{tpu_custom_call.1} parent=63 // pred_check
          %p1978 = pneg %p158
        $region66: #{tpu_custom_call.1} parent=63 // pred_check_branch
          %1980 = sbr.rel (%p1978) target = $region68
        $region67: #{tpu_custom_call.1} parent=63 // pred_region
          %s1981 = sand.u32 %s143, 1
          %s1982 = scalar_lea.sflag [#allocation4], %s1981
          %s1983 = sand.u32 %s143, 1
          %s1984 = smul.addr %s1983, 128
          %s1985 = scalar_lea.vmem [#allocation10], %s1984
          %1986 = dma.done %s1982, 2048
        $region68: #{tpu_custom_call.1} parent=63 // pred_fallthru
          _
      $region64: #{tpu_custom_call.1} parent=5 // pred_fallthru
        _
    $region6: #{tpu_custom_call.1} parent=1 // loop_footer
      %s23 = sadd.s32 1, %s19
    $region7: #{tpu_custom_call.1} parent=1 // loop_footer_branch
      %18 = sbr.rel target = $region3
    $region8: #{tpu_custom_call.1} parent=1 // loop_exit
      _
    %1987 = vsyncpa [#allocation3], 1
    %s1988 = scalar_lea.sflag [#allocation3], 1
    %1989 = vsyncpa %s1988, 1
    %1990 = vsyncpa [#allocation6], 1
    %1991 = vsyncpa [#allocation9], 1
    %1992 = vsyncpa [#allocation4], 1
    %s1993 = scalar_lea.sflag [#allocation4], 1
    %1994 = vsyncpa %s1993, 1

</llo_original>
